<compile_context>
chip_gen: v7x
topology: tpu7x:2x2x1
jax: 0.10.0
libtpu: 0.0.40
codegen_flags: <defaults>
</compile_context>

<pallas_src>
import numpy as np
import jax
import jax.numpy as jnp
from jax.experimental import pallas as pl
from jax.experimental.pallas import tpu as pltpu


# ----------------------------------------------------------------------------
# Mask construction (pure numpy glue — mirrors models.py exactly)
# ----------------------------------------------------------------------------
def build_module_connector(membership_mask, first_layer_nodes):
    return np.repeat(membership_mask, first_layer_nodes, axis=0).T


def build_separation_mask(input_dim, output_dim, nmodules):
    # block_diag of identical blocks == kron(eye, block)
    return np.kron(np.eye(nmodules), np.ones((input_dim, output_dim)))


def build_mask_list(membership_mask, hidden_layers, latent_dim):
    nmodules, _ = membership_mask.shape
    base = [build_module_connector(membership_mask, hidden_layers[0])]
    dims = list(hidden_layers) + [latent_dim]
    for din, dout in zip(dims[:-1], dims[1:]):
        base.append(build_separation_mask(din, dout, nmodules))
    return [m.astype(np.float32) for m in base]


def _round_up(n, m):
    return ((n + m - 1) // m) * m


# ----------------------------------------------------------------------------
# Fused Pallas kernel
# ----------------------------------------------------------------------------
def make_pmvae_kernel(n_hidden_layers):
    """Fused forward kernel.

    Ref order:
      x (bf16), eps (f32), gb_packed (f32, (2*n_bn, max_out)),
      weights (bf16, pre-masked, (in, out)):
          enc hidden x n_h, W_mu, W_logvar, dec x n_h, merge (out dim padded
          to a multiple of 128 with zero columns),
      outputs: slab (f32, (B, slab_w)) = [z | mu | logvar | module_outputs | 0],
               recon_padded (f32, (B, F_pad)).

    Linear biases are omitted: a constant bias immediately followed by
    training-mode BatchNorm is cancelled exactly by the batch-mean subtraction.
    TODO(synk): if eval-mode (running-stats) BN is ever needed, the bias
    cancellation no longer holds and biases must be reinstated.
    """
    n_w = 2 * n_hidden_layers + 3

    def kernel(*refs):
        x_ref, eps_ref, gb_ref = refs[0], refs[1], refs[2]
        w = refs[3:3 + n_w]
        slab_ref, recon_ref = refs[3 + n_w], refs[4 + n_w]

        def mdot(h, w_ref):
            # MXU-native bf16 x bf16 -> f32 accumulation.
            hb = h if h.dtype == jnp.bfloat16 else h.astype(jnp.bfloat16)
            return jnp.dot(hb, w_ref[...], preferred_element_type=jnp.float32)

        def batch_norm(h, bn_idx):
            # nn.BatchNorm1d training mode (biased batch stats, eps=1e-5).
            # Two-pass centered variance: matches PyTorch numerics, reuses the
            # centered value for normalization.
            out_f = h.shape[-1]
            inv_n = 1.0 / h.shape[0]
            mean = jnp.sum(h, axis=0, keepdims=True) * inv_n
            c = h - mean
            var = jnp.sum(c * c, axis=0, keepdims=True) * inv_n
            gamma = gb_ref[2 * bn_idx:2 * bn_idx + 1, :out_f]
            beta = gb_ref[2 * bn_idx + 1:2 * bn_idx + 2, :out_f]
            return c * jax.lax.rsqrt(var + 1e-5) * gamma + beta

        def elu(h):
            # ELU(x) = x if x>0 else exp(x)-1; clamp the exp argument so the
            # discarded positive branch cannot overflow.
            return jnp.where(h > 0, h, jnp.exp(jnp.minimum(h, 0.0)) - 1.0)

        wi, bi = 0, 0
        h = x_ref[...]            # already bf16 (cast at the call boundary)

        # --- encoder hidden layers: pre-masked linear -> BN -> ELU ---
        for _ in range(n_hidden_layers):
            h = elu(batch_norm(mdot(h, w[wi]), bi))
            wi += 1
            bi += 1

        # --- encoder final layer: weight pre-split into mu / logvar halves,
        #     the bf16 cast of h is hoisted and reused by both matmuls ---
        hb = h if h.dtype == jnp.bfloat16 else h.astype(jnp.bfloat16)
        mu = batch_norm(
            jnp.dot(hb, w[wi][...], preferred_element_type=jnp.float32), bi)
        wi += 1
        bi += 1
        logvar = batch_norm(
            jnp.dot(hb, w[wi][...], preferred_element_type=jnp.float32), bi)
        wi += 1
        bi += 1

        # --- reparametrize: z = mu + exp(logvar / 2) * eps ---
        z = mu + jnp.exp(logvar * 0.5) * eps_ref[...]

        # --- decoder layers: pre-masked linear -> BN -> ELU ---
        # TODO(synk): at ~100 modules the block-diagonal separation masks could
        # be exploited with a batched 'bmk,mkn->bmn' einsum instead of dense
        # pre-masked matmuls; low priority vs. the first/merge layers.
        h = z
        for _ in range(n_hidden_layers):
            h = elu(batch_norm(mdot(h, w[wi]), bi))
            wi += 1
            bi += 1
        module_outputs = h

        # --- merge layer: pre-masked linear, bias_last_layer=False ---
        # Merge weight's out dim is host-padded to a multiple of 128 so this
        # store is fully lane-dense.
        recon_ref[...] = mdot(module_outputs, w[wi])

        # --- lane-dense packed output slab [z | mu | logvar | mo | 0-pad] ---
        parts = [z, mu, logvar, module_outputs]
        used = sum(int(p.shape[-1]) for p in parts)
        pad = int(slab_ref.shape[-1]) - used
        if pad:
            parts.append(jnp.zeros((z.shape[0], pad), jnp.float32))
        slab_ref[...] = jnp.concatenate(parts, axis=-1)

    return kernel


def _pack_gb(gb_list):
    """Pack all per-layer (gamma; beta) pairs into one (2*n, max_out) array."""
    n = len(gb_list)
    max_out = max(int(g.shape[1]) for g in gb_list)
    packed = np.zeros((2 * n, max_out), np.float32)
    for i, g in enumerate(gb_list):
        packed[2 * i:2 * i + 2, :g.shape[1]] = np.asarray(g, np.float32)
    return jnp.asarray(packed)


def _pick_vmem_limit_bytes():
    cap = None
    try:
        cap = getattr(pltpu.get_tpu_info(), "vmem_capacity_bytes", None)
    except Exception:
        cap = None
    if not cap:
        cap = 128 * 1024 * 1024
    # ~96-100 MiB on 128 MiB chips (v5e/v6e), ~48 MiB on v7x (64 MiB physical).
    return int(min(100 * 1024 * 1024, cap * 3 // 4))


def pmvae_forward(x, eps, enc_hidden, enc_final, dec_layers, merge_w,
                  latent_total):
    """Fused pmVAE forward. Returns (z, global_recon, module_outputs, mu, logvar).

    enc_hidden : list of (W bf16 pre-masked (in,out), gb f32 (2,out))
    enc_final  : (W_mu, gb_mu, W_logvar, gb_logvar)
    dec_layers : list of (W, gb)
    merge_w    : bf16 pre-masked (mo_w, F), no bias, no BN
    """
    n_h = len(dec_layers)
    B, F = x.shape
    mo_w = merge_w.shape[0]

    w_mu, gb_mu, w_lv, gb_lv = enc_final

    weights = [w for w, _ in enc_hidden] + [w_mu, w_lv] \
        + [w for w, _ in dec_layers]
    gb_list = [gb for _, gb in enc_hidden] + [gb_mu, gb_lv] \
        + [gb for _, gb in dec_layers]
    gb_packed = _pack_gb(gb_list)

    # Pad merge weight columns to a multiple of 128 so recon is lane-dense.
    F_pad = _round_up(F, 128)
    merge_wp = jnp.pad(merge_w, ((0, 0), (0, F_pad - F)))
    weights.append(merge_wp)

    slab_w = _round_up(3 * latent_total + mo_w, 128)

    out_shape = (
        jax.ShapeDtypeStruct((B, slab_w), jnp.float32),   # z|mu|logvar|mo|pad
        jax.ShapeDtypeStruct((B, F_pad), jnp.float32),    # global_recon padded
    )

    kernel = make_pmvae_kernel(n_h)
    vmem = pl.BlockSpec(memory_space=pltpu.MemorySpace.VMEM)
    n_inputs = 3 + len(weights)

    slab, recon_p = pl.pallas_call(
        kernel,
        out_shape=out_shape,
        in_specs=[vmem] * n_inputs,
        out_specs=(vmem, vmem),
        compiler_params=pltpu.CompilerParams(
            vmem_limit_bytes=_pick_vmem_limit_bytes()),
    )(x.astype(jnp.bfloat16), eps, gb_packed, *weights)

    z = slab[:, :latent_total]
    mu = slab[:, latent_total:2 * latent_total]
    logvar = slab[:, 2 * latent_total:3 * latent_total]
    module_outputs = slab[:, 3 * latent_total:3 * latent_total + mo_w]
    global_recon = recon_p[:, :F]
    return z, global_recon, module_outputs, mu, logvar


# ----------------------------------------------------------------------------
# Pure-JAX reference (same math, no Pallas) for the correctness check
# ----------------------------------------------------------------------------
def pmvae_forward_ref(x, eps, enc_hidden, enc_final, dec_layers, merge_w,
                      latent_total):
    def mdot(h, w):
        return jnp.dot(h.astype(jnp.bfloat16), w,
                       preferred_element_type=jnp.float32)

    def bn(h, gb):
        inv_n = 1.0 / h.shape[0]
        mean = jnp.sum(h, axis=0, keepdims=True) * inv_n
        c = h - mean
        var = jnp.sum(c * c, axis=0, keepdims=True) * inv_n
        return c * jax.lax.rsqrt(var + 1e-5) * gb[0:1] + gb[1:2]

    def elu(h):
        return jnp.where(h > 0, h, jnp.exp(jnp.minimum(h, 0.0)) - 1.0)

    h = x
    for w, gb in enc_hidden:
        h = elu(bn(mdot(h, w), gb))
    w_mu, gb_mu, w_lv, gb_lv = enc_final
    mu = bn(mdot(h, w_mu), gb_mu)
    logvar = bn(mdot(h, w_lv), gb_lv)
    z = mu + jnp.exp(logvar * 0.5) * eps
    h = z
    for w, gb in dec_layers:
        h = elu(bn(mdot(h, w), gb))
    recon = mdot(h, merge_w)
    return z, recon, h, mu, logvar


# ----------------------------------------------------------------------------
# Host-side parameter construction (CustomizedLinear.reset_parameters style)
# ----------------------------------------------------------------------------
def init_layer(key, mask_np):
    """Weight is pre-multiplied by its mask and stored in bf16.  The linear
    bias is dropped (exactly cancelled by the following training-mode
    BatchNorm); gb stacks the BatchNorm (gamma; beta)."""
    in_f, out_f = mask_np.shape
    stdv = 1.0 / float(np.sqrt(in_f))
    w = jax.random.uniform(key, (in_f, out_f), jnp.float32, -stdv, stdv)
    w = (w * jnp.asarray(mask_np, jnp.float32)).astype(jnp.bfloat16)
    gb = jnp.concatenate([jnp.ones((1, out_f), jnp.float32),
                          jnp.zeros((1, out_f), jnp.float32)], axis=0)
    return w, gb


def init_merge(key, mask_np):
    in_f, out_f = mask_np.shape
    stdv = 1.0 / float(np.sqrt(in_f))
    w = jax.random.uniform(key, (in_f, out_f), jnp.float32, -stdv, stdv)
    return (w * jnp.asarray(mask_np, jnp.float32)).astype(jnp.bfloat16)


if __name__ == "__main__":
    # Small pmVAE configuration.  batch=64 (multiple of 16 for bf16 sublane
    # packing); realistic runs should use batch tiles >= 256 to fill the MXU.
    batch = 64
    nmodules = 4
    nfeats = 32
    hidden_layers = [8]
    latent_dim = 4
    latent_total = nmodules * latent_dim   # width of mu (and of logvar)

    n_h = len(hidden_layers)
    keys = jax.random.split(jax.random.PRNGKey(0), 2 * n_h + 5)
    k_mm, k_x, k_eps = keys[0], keys[1], keys[2]
    k_layers = keys[3:]

    # membership_mask: pathways x genes (bool), deterministic
    membership_mask = np.array(
        jax.random.uniform(k_mm, (nmodules, nfeats)) < 0.5, dtype=np.float32)
    membership_mask[:, 0] = 1.0  # make sure every pathway touches >= 1 gene

    # Encoder masks (unsupervised=True hstacks the final mask for mu/logvar)
    enc_masks = build_mask_list(membership_mask, hidden_layers, latent_dim)
    enc_masks[-1] = np.hstack([enc_masks[-1], enc_masks[-1]])
    # Decoder masks: reversed + transposed base masks
    base_masks = build_mask_list(membership_mask, hidden_layers, latent_dim)
    dec_masks = [m.T for m in base_masks[::-1]]

    ki = 0
    # Encoder hidden layers
    enc_hidden = []
    for m in enc_masks[:-1]:
        enc_hidden.append(init_layer(k_layers[ki], m)); ki += 1
    # Encoder final (mu|logvar) layer: split on the host into mu / logvar halves
    w_full, gb_full = init_layer(k_layers[ki], enc_masks[-1]); ki += 1
    enc_final = (w_full[:, :latent_total], gb_full[:, :latent_total],
                 w_full[:, latent_total:], gb_full[:, latent_total:])
    # Decoder layers (all but the last decoding mask)
    dec_layers = []
    for m in dec_masks[:-1]:
        dec_layers.append(init_layer(k_layers[ki], m)); ki += 1
    # Merge layer (bias_last_layer=False, no BN)
    merge_w = init_merge(k_layers[ki], dec_masks[-1])

    # Inputs: gene expression x and the reparametrization noise eps
    x = jax.random.normal(k_x, (batch, nfeats), jnp.float32)
    eps = jax.random.normal(k_eps, (batch, latent_total), jnp.float32)

    outs = pmvae_forward(x, eps, enc_hidden, enc_final, dec_layers, merge_w,
                         latent_total)
    outs = jax.block_until_ready(outs)

    refs = pmvae_forward_ref(x, eps, enc_hidden, enc_final, dec_layers,
                             merge_w, latent_total)
    for o, r in zip(outs, refs):
        np.testing.assert_allclose(np.asarray(o), np.asarray(r),
                                   rtol=1e-3, atol=1e-3)

    print("KERNEL_OK")
</pallas_src>

<mosaic_0001>
module attributes {stable_mosaic.version = 11 : i64} {
  func.func @kernel(%arg0: memref<64x32xbf16, #tpu.memory_space<vmem>>, %arg1: memref<64x16xf32, #tpu.memory_space<vmem>>, %arg2: memref<8x32xf32, #tpu.memory_space<vmem>>, %arg3: memref<32x32xbf16, #tpu.memory_space<vmem>>, %arg4: memref<32x16xbf16, #tpu.memory_space<vmem>>, %arg5: memref<32x16xbf16, #tpu.memory_space<vmem>>, %arg6: memref<16x32xbf16, #tpu.memory_space<vmem>>, %arg7: memref<32x128xbf16, #tpu.memory_space<vmem>>, %arg8: memref<64x128xf32, #tpu.memory_space<vmem>>, %arg9: memref<64x128xf32, #tpu.memory_space<vmem>>) attributes {dimension_semantics = [], scalar_prefetch = 0 : i64, scratch_operands = 0 : i64, tpu.core_type = #tpu.core_type<tc>} {
    %c0 = arith.constant 0 : index
    %c0_0 = arith.constant 0 : index
    %0 = vector.load %arg0[%c0, %c0_0] : memref<64x32xbf16, #tpu.memory_space<vmem>>, vector<64x32xbf16>
    %c0_1 = arith.constant 0 : index
    %c0_2 = arith.constant 0 : index
    %1 = vector.load %arg3[%c0_1, %c0_2] : memref<32x32xbf16, #tpu.memory_space<vmem>>, vector<32x32xbf16>
    %cst = arith.constant dense<0.000000e+00> : vector<64x32xf32>
    %2 = tpu.matmul %0, %1, %cst {dimension_numbers = #tpu.dot_dimension_numbers<[1], [0], [0], [1], [0, 0, 1, 1], [], []>} : vector<64x32xbf16>, vector<32x32xbf16>, vector<64x32xf32> -> vector<64x32xf32>
    %cst_3 = arith.constant dense<0.000000e+00> : vector<32xf32>
    %3 = vector.multi_reduction <add>, %2, %cst_3 [0] : vector<64x32xf32> to vector<32xf32>
    %4 = vector.shape_cast %3 : vector<32xf32> to vector<1x32xf32>
    %cst_4 = arith.constant 1.562500e-02 : f32
    %5 = vector.broadcast %cst_4 : f32 to vector<1x32xf32>
    %6 = arith.mulf %4, %5 : vector<1x32xf32>
    %7 = vector.broadcast %6 : vector<1x32xf32> to vector<64x32xf32>
    %8 = arith.subf %2, %7 : vector<64x32xf32>
    %9 = arith.mulf %8, %8 : vector<64x32xf32>
    %cst_5 = arith.constant dense<0.000000e+00> : vector<32xf32>
    %10 = vector.multi_reduction <add>, %9, %cst_5 [0] : vector<64x32xf32> to vector<32xf32>
    %11 = vector.shape_cast %10 : vector<32xf32> to vector<1x32xf32>
    %cst_6 = arith.constant 1.562500e-02 : f32
    %12 = vector.broadcast %cst_6 : f32 to vector<1x32xf32>
    %13 = arith.mulf %11, %12 : vector<1x32xf32>
    %c0_7 = arith.constant 0 : index
    %c0_8 = arith.constant 0 : index
    %14 = vector.load %arg2[%c0_7, %c0_8] : memref<8x32xf32, #tpu.memory_space<vmem>>, vector<1x32xf32>
    %c1 = arith.constant 1 : index
    %c0_9 = arith.constant 0 : index
    %15 = vector.load %arg2[%c1, %c0_9] : memref<8x32xf32, #tpu.memory_space<vmem>>, vector<1x32xf32>
    %cst_10 = arith.constant 9.99999974E-6 : f32
    %16 = vector.broadcast %cst_10 : f32 to vector<1x32xf32>
    %17 = arith.addf %13, %16 : vector<1x32xf32>
    %18 = math.rsqrt %17 : vector<1x32xf32>
    %19 = vector.broadcast %18 : vector<1x32xf32> to vector<64x32xf32>
    %20 = arith.mulf %8, %19 : vector<64x32xf32>
    %21 = vector.broadcast %14 : vector<1x32xf32> to vector<64x32xf32>
    %22 = arith.mulf %20, %21 : vector<64x32xf32>
    %23 = vector.broadcast %15 : vector<1x32xf32> to vector<64x32xf32>
    %24 = arith.addf %22, %23 : vector<64x32xf32>
    %cst_11 = arith.constant 0.000000e+00 : f32
    %25 = vector.broadcast %cst_11 : f32 to vector<64x32xf32>
    %26 = arith.cmpf ogt, %24, %25 : vector<64x32xf32>
    %cst_12 = arith.constant 0.000000e+00 : f32
    %27 = vector.broadcast %cst_12 : f32 to vector<64x32xf32>
    %28 = arith.minimumf %24, %27 : vector<64x32xf32>
    %29 = math.exp %28 : vector<64x32xf32>
    %cst_13 = arith.constant 1.000000e+00 : f32
    %30 = vector.broadcast %cst_13 : f32 to vector<64x32xf32>
    %31 = arith.subf %29, %30 : vector<64x32xf32>
    %32 = arith.select %26, %24, %31 : vector<64x32xi1>, vector<64x32xf32>
    %33 = arith.truncf %32 : vector<64x32xf32> to vector<64x32xbf16>
    %c0_14 = arith.constant 0 : index
    %c0_15 = arith.constant 0 : index
    %34 = vector.load %arg4[%c0_14, %c0_15] : memref<32x16xbf16, #tpu.memory_space<vmem>>, vector<32x16xbf16>
    %cst_16 = arith.constant dense<0.000000e+00> : vector<64x16xf32>
    %35 = tpu.matmul %33, %34, %cst_16 {dimension_numbers = #tpu.dot_dimension_numbers<[1], [0], [0], [1], [0, 0, 1, 1], [], []>} : vector<64x32xbf16>, vector<32x16xbf16>, vector<64x16xf32> -> vector<64x16xf32>
    %cst_17 = arith.constant dense<0.000000e+00> : vector<16xf32>
    %36 = vector.multi_reduction <add>, %35, %cst_17 [0] : vector<64x16xf32> to vector<16xf32>
    %37 = vector.shape_cast %36 : vector<16xf32> to vector<1x16xf32>
    %cst_18 = arith.constant 1.562500e-02 : f32
    %38 = vector.broadcast %cst_18 : f32 to vector<1x16xf32>
    %39 = arith.mulf %37, %38 : vector<1x16xf32>
    %40 = vector.broadcast %39 : vector<1x16xf32> to vector<64x16xf32>
    %41 = arith.subf %35, %40 : vector<64x16xf32>
    %42 = arith.mulf %41, %41 : vector<64x16xf32>
    %cst_19 = arith.constant dense<0.000000e+00> : vector<16xf32>
    %43 = vector.multi_reduction <add>, %42, %cst_19 [0] : vector<64x16xf32> to vector<16xf32>
    %44 = vector.shape_cast %43 : vector<16xf32> to vector<1x16xf32>
    %cst_20 = arith.constant 1.562500e-02 : f32
    %45 = vector.broadcast %cst_20 : f32 to vector<1x16xf32>
    %46 = arith.mulf %44, %45 : vector<1x16xf32>
    %c2 = arith.constant 2 : index
    %c0_21 = arith.constant 0 : index
    %47 = vector.load %arg2[%c2, %c0_21] : memref<8x32xf32, #tpu.memory_space<vmem>>, vector<1x16xf32>
    %c3 = arith.constant 3 : index
    %c0_22 = arith.constant 0 : index
    %48 = vector.load %arg2[%c3, %c0_22] : memref<8x32xf32, #tpu.memory_space<vmem>>, vector<1x16xf32>
    %cst_23 = arith.constant 9.99999974E-6 : f32
    %49 = vector.broadcast %cst_23 : f32 to vector<1x16xf32>
    %50 = arith.addf %46, %49 : vector<1x16xf32>
    %51 = math.rsqrt %50 : vector<1x16xf32>
    %52 = vector.broadcast %51 : vector<1x16xf32> to vector<64x16xf32>
    %53 = arith.mulf %41, %52 : vector<64x16xf32>
    %54 = vector.broadcast %47 : vector<1x16xf32> to vector<64x16xf32>
    %55 = arith.mulf %53, %54 : vector<64x16xf32>
    %56 = vector.broadcast %48 : vector<1x16xf32> to vector<64x16xf32>
    %57 = arith.addf %55, %56 : vector<64x16xf32>
    %c0_24 = arith.constant 0 : index
    %c0_25 = arith.constant 0 : index
    %58 = vector.load %arg5[%c0_24, %c0_25] : memref<32x16xbf16, #tpu.memory_space<vmem>>, vector<32x16xbf16>
    %cst_26 = arith.constant dense<0.000000e+00> : vector<64x16xf32>
    %59 = tpu.matmul %33, %58, %cst_26 {dimension_numbers = #tpu.dot_dimension_numbers<[1], [0], [0], [1], [0, 0, 1, 1], [], []>} : vector<64x32xbf16>, vector<32x16xbf16>, vector<64x16xf32> -> vector<64x16xf32>
    %cst_27 = arith.constant dense<0.000000e+00> : vector<16xf32>
    %60 = vector.multi_reduction <add>, %59, %cst_27 [0] : vector<64x16xf32> to vector<16xf32>
    %61 = vector.shape_cast %60 : vector<16xf32> to vector<1x16xf32>
    %cst_28 = arith.constant 1.562500e-02 : f32
    %62 = vector.broadcast %cst_28 : f32 to vector<1x16xf32>
    %63 = arith.mulf %61, %62 : vector<1x16xf32>
    %64 = vector.broadcast %63 : vector<1x16xf32> to vector<64x16xf32>
    %65 = arith.subf %59, %64 : vector<64x16xf32>
    %66 = arith.mulf %65, %65 : vector<64x16xf32>
    %cst_29 = arith.constant dense<0.000000e+00> : vector<16xf32>
    %67 = vector.multi_reduction <add>, %66, %cst_29 [0] : vector<64x16xf32> to vector<16xf32>
    %68 = vector.shape_cast %67 : vector<16xf32> to vector<1x16xf32>
    %cst_30 = arith.constant 1.562500e-02 : f32
    %69 = vector.broadcast %cst_30 : f32 to vector<1x16xf32>
    %70 = arith.mulf %68, %69 : vector<1x16xf32>
    %c4 = arith.constant 4 : index
    %c0_31 = arith.constant 0 : index
    %71 = vector.load %arg2[%c4, %c0_31] : memref<8x32xf32, #tpu.memory_space<vmem>>, vector<1x16xf32>
    %c5 = arith.constant 5 : index
    %c0_32 = arith.constant 0 : index
    %72 = vector.load %arg2[%c5, %c0_32] : memref<8x32xf32, #tpu.memory_space<vmem>>, vector<1x16xf32>
    %cst_33 = arith.constant 9.99999974E-6 : f32
    %73 = vector.broadcast %cst_33 : f32 to vector<1x16xf32>
    %74 = arith.addf %70, %73 : vector<1x16xf32>
    %75 = math.rsqrt %74 : vector<1x16xf32>
    %76 = vector.broadcast %75 : vector<1x16xf32> to vector<64x16xf32>
    %77 = arith.mulf %65, %76 : vector<64x16xf32>
    %78 = vector.broadcast %71 : vector<1x16xf32> to vector<64x16xf32>
    %79 = arith.mulf %77, %78 : vector<64x16xf32>
    %80 = vector.broadcast %72 : vector<1x16xf32> to vector<64x16xf32>
    %81 = arith.addf %79, %80 : vector<64x16xf32>
    %cst_34 = arith.constant 5.000000e-01 : f32
    %82 = vector.broadcast %cst_34 : f32 to vector<64x16xf32>
    %83 = arith.mulf %81, %82 : vector<64x16xf32>
    %84 = math.exp %83 : vector<64x16xf32>
    %c0_35 = arith.constant 0 : index
    %c0_36 = arith.constant 0 : index
    %85 = vector.load %arg1[%c0_35, %c0_36] : memref<64x16xf32, #tpu.memory_space<vmem>>, vector<64x16xf32>
    %86 = arith.mulf %84, %85 : vector<64x16xf32>
    %87 = arith.addf %57, %86 : vector<64x16xf32>
    %88 = arith.truncf %87 : vector<64x16xf32> to vector<64x16xbf16>
    %c0_37 = arith.constant 0 : index
    %c0_38 = arith.constant 0 : index
    %89 = vector.load %arg6[%c0_37, %c0_38] : memref<16x32xbf16, #tpu.memory_space<vmem>>, vector<16x32xbf16>
    %cst_39 = arith.constant dense<0.000000e+00> : vector<64x32xf32>
    %90 = tpu.matmul %88, %89, %cst_39 {dimension_numbers = #tpu.dot_dimension_numbers<[1], [0], [0], [1], [0, 0, 1, 1], [], []>} : vector<64x16xbf16>, vector<16x32xbf16>, vector<64x32xf32> -> vector<64x32xf32>
    %cst_40 = arith.constant dense<0.000000e+00> : vector<32xf32>
    %91 = vector.multi_reduction <add>, %90, %cst_40 [0] : vector<64x32xf32> to vector<32xf32>
    %92 = vector.shape_cast %91 : vector<32xf32> to vector<1x32xf32>
    %cst_41 = arith.constant 1.562500e-02 : f32
    %93 = vector.broadcast %cst_41 : f32 to vector<1x32xf32>
    %94 = arith.mulf %92, %93 : vector<1x32xf32>
    %95 = vector.broadcast %94 : vector<1x32xf32> to vector<64x32xf32>
    %96 = arith.subf %90, %95 : vector<64x32xf32>
    %97 = arith.mulf %96, %96 : vector<64x32xf32>
    %cst_42 = arith.constant dense<0.000000e+00> : vector<32xf32>
    %98 = vector.multi_reduction <add>, %97, %cst_42 [0] : vector<64x32xf32> to vector<32xf32>
    %99 = vector.shape_cast %98 : vector<32xf32> to vector<1x32xf32>
    %cst_43 = arith.constant 1.562500e-02 : f32
    %100 = vector.broadcast %cst_43 : f32 to vector<1x32xf32>
    %101 = arith.mulf %99, %100 : vector<1x32xf32>
    %c6 = arith.constant 6 : index
    %c0_44 = arith.constant 0 : index
    %102 = vector.load %arg2[%c6, %c0_44] : memref<8x32xf32, #tpu.memory_space<vmem>>, vector<1x32xf32>
    %c7 = arith.constant 7 : index
    %c0_45 = arith.constant 0 : index
    %103 = vector.load %arg2[%c7, %c0_45] : memref<8x32xf32, #tpu.memory_space<vmem>>, vector<1x32xf32>
    %cst_46 = arith.constant 9.99999974E-6 : f32
    %104 = vector.broadcast %cst_46 : f32 to vector<1x32xf32>
    %105 = arith.addf %101, %104 : vector<1x32xf32>
    %106 = math.rsqrt %105 : vector<1x32xf32>
    %107 = vector.broadcast %106 : vector<1x32xf32> to vector<64x32xf32>
    %108 = arith.mulf %96, %107 : vector<64x32xf32>
    %109 = vector.broadcast %102 : vector<1x32xf32> to vector<64x32xf32>
    %110 = arith.mulf %108, %109 : vector<64x32xf32>
    %111 = vector.broadcast %103 : vector<1x32xf32> to vector<64x32xf32>
    %112 = arith.addf %110, %111 : vector<64x32xf32>
    %cst_47 = arith.constant 0.000000e+00 : f32
    %113 = vector.broadcast %cst_47 : f32 to vector<64x32xf32>
    %114 = arith.cmpf ogt, %112, %113 : vector<64x32xf32>
    %cst_48 = arith.constant 0.000000e+00 : f32
    %115 = vector.broadcast %cst_48 : f32 to vector<64x32xf32>
    %116 = arith.minimumf %112, %115 : vector<64x32xf32>
    %117 = math.exp %116 : vector<64x32xf32>
    %cst_49 = arith.constant 1.000000e+00 : f32
    %118 = vector.broadcast %cst_49 : f32 to vector<64x32xf32>
    %119 = arith.subf %117, %118 : vector<64x32xf32>
    %120 = arith.select %114, %112, %119 : vector<64x32xi1>, vector<64x32xf32>
    %121 = arith.truncf %120 : vector<64x32xf32> to vector<64x32xbf16>
    %c0_50 = arith.constant 0 : index
    %c0_51 = arith.constant 0 : index
    %122 = vector.load %arg7[%c0_50, %c0_51] : memref<32x128xbf16, #tpu.memory_space<vmem>>, vector<32x128xbf16>
    %cst_52 = arith.constant dense<0.000000e+00> : vector<64x128xf32>
    %123 = tpu.matmul %121, %122, %cst_52 {dimension_numbers = #tpu.dot_dimension_numbers<[1], [0], [0], [1], [0, 0, 1, 1], [], []>} : vector<64x32xbf16>, vector<32x128xbf16>, vector<64x128xf32> -> vector<64x128xf32>
    %c0_53 = arith.constant 0 : index
    %c0_54 = arith.constant 0 : index
    %124 = vector.load %arg9[%c0_53, %c0_54] : memref<64x128xf32, #tpu.memory_space<vmem>>, vector<64x128xf32>
    tpu.vector_store %arg9[%c0_53, %c0_54], %123 {strides = array<i32>} : memref<64x128xf32, #tpu.memory_space<vmem>>, vector<64x128xf32>,
    %cst_55 = arith.constant 0.000000e+00 : f32
    %125 = vector.broadcast %cst_55 : f32 to vector<64x48xf32>
    %126 = tpu.concatenate %87, %57, %81, %120, %125 in 1 : vector<64x16xf32>, vector<64x16xf32>, vector<64x16xf32>, vector<64x32xf32>, vector<64x48xf32> -> vector<64x128xf32>
    %c0_56 = arith.constant 0 : index
    %c0_57 = arith.constant 0 : index
    %127 = vector.load %arg8[%c0_56, %c0_57] : memref<64x128xf32, #tpu.memory_space<vmem>>, vector<64x128xf32>
    tpu.vector_store %arg8[%c0_56, %c0_57], %126 {strides = array<i32>} : memref<64x128xf32, #tpu.memory_space<vmem>>, vector<64x128xf32>,
    return
  }
}

</mosaic_0001>

<llo_original>
// kernel: tpu_custom_call.1
$region0: #{tpu_custom_call.1}
  #allocation0 [shape = 'u32[]', space=smem, size = 0x4, offset = 0x4, fixed_abs, tag = 'smem constant byte address 0x4 - core index']
  #allocation1 [shape = 'u32[144,128]{1,0:T(1,128)}', space=vmem, size = 0x12000, scoped, tag = 'internal scratch']
  %s0 = inlined_call_operand.hbm [shape: bf16[64,32], index: 0, kind: input, shape index: {}]
  %s1 = inlined_call_operand.hbm [shape: f32[64,16], index: 1, kind: input, shape index: {}]
  %s2 = inlined_call_operand.hbm [shape: f32[8,32], index: 2, kind: input, shape index: {}]
  %s3 = inlined_call_operand.hbm [shape: bf16[32,32], index: 3, kind: input, shape index: {}]
  %s4 = inlined_call_operand.hbm [shape: bf16[32,16], index: 4, kind: input, shape index: {}]
  %s5 = inlined_call_operand.hbm [shape: bf16[32,16], index: 5, kind: input, shape index: {}]
  %s6 = inlined_call_operand.hbm [shape: bf16[16,32], index: 6, kind: input, shape index: {}]
  %s7 = inlined_call_operand.hbm [shape: bf16[32,128], index: 7, kind: input, shape index: {}]
  %s8 = inlined_call_operand.hbm [shape: f32[64,128], index: 8, kind: output, shape index: {0}]
  %s9 = inlined_call_operand.hbm [shape: f32[64,128], index: 9, kind: output, shape index: {1}]
  %10 = xla_tuple %s8, %s9
  %s11 = sld [smem:[#allocation0]]
  $region82: #{tpu_custom_call.1} parent=0
    _
  %s13 = ssub.s32 1, %s11
  %s14 = scalar_select 0, %s13, %s11
  $region1: #{tpu_custom_call.1} parent=0
    #allocation2 [shape = 'u8[16384]{0}', space=vmem, size = 0x4000, scoped, tag = 'input window, operand 0, single buffered']
    #allocation3 [shape = 's32[1]{0}', space=sflag, size = 0x4, scoped, tag = 'scoped memory for tpu_custom_call.1']
    #allocation4 [shape = 's32[1]{0}', space=sflag, size = 0x4, scoped, tag = 'scoped memory for tpu_custom_call.1']
    #allocation5 [shape = 'u8[32768]{0}', space=vmem, size = 0x8000, scoped, tag = 'input window, operand 1, single buffered']
    #allocation6 [shape = 's32[1]{0}', space=sflag, size = 0x4, scoped, tag = 'scoped memory for tpu_custom_call.1']
    #allocation7 [shape = 'u8[4096]{0}', space=vmem, size = 0x1000, scoped, tag = 'input window, operand 2, single buffered']
    #allocation8 [shape = 'u8[8192]{0}', space=vmem, size = 0x2000, scoped, tag = 'input window, operand 3, single buffered']
    #allocation9 [shape = 's32[1]{0}', space=sflag, size = 0x4, scoped, tag = 'scoped memory for tpu_custom_call.1']
    #allocation10 [shape = 'u8[8192]{0}', space=vmem, size = 0x2000, scoped, tag = 'input window, operand 4, single buffered']
    #allocation11 [shape = 'u8[8192]{0}', space=vmem, size = 0x2000, scoped, tag = 'input window, operand 5, single buffered']
    #allocation12 [shape = 's32[1]{0}', space=sflag, size = 0x4, scoped, tag = 'scoped memory for tpu_custom_call.1']
    #allocation13 [shape = 'u8[4096]{0}', space=vmem, size = 0x1000, scoped, tag = 'input window, operand 6, single buffered']
    #allocation14 [shape = 'u8[8192]{0}', space=vmem, size = 0x2000, scoped, tag = 'input window, operand 7, single buffered']
    #allocation15 [shape = 's32[1]{0}', space=sflag, size = 0x4, scoped, tag = 'scoped memory for tpu_custom_call.1']
    #allocation16 [shape = 'u8[32768]{0}', space=vmem, size = 0x8000, scoped, tag = 'output window, operand 0, single buffered']
    #allocation17 [shape = 'u8[32768]{0}', space=vmem, size = 0x8000, scoped, tag = 'output window, operand 1, single buffered']
    #allocation18 [shape = 's32[1]{0}', space=sflag, size = 0x4, scoped, tag = 'scoped memory for tpu_custom_call.1']
    %15 = vsyncpa [#allocation3], 0
    %16 = vsyncpa [#allocation6], 0
    %17 = vsyncpa [#allocation9], 0
    %18 = vsyncpa [#allocation12], 0
    %19 = vsyncpa [#allocation15], 0
    %20 = vsyncpa [#allocation4], 0
    %21 = vsyncpa [#allocation18], 0
    // Predicated region
    $region2: #{tpu_custom_call.1} parent=1 // pred_check
      _
    $region3: #{tpu_custom_call.1} parent=1 // pred_check_branch
      %23 = sbr.rel (0) target = $region5
    $region4: #{tpu_custom_call.1} parent=1 // pred_region
      %s25 = ssub.s32 512, 512
      %26 = vsyncadd [#allocation3], %s25
      %s27 = sshll.u32 [#allocation2], 4
      %s28 = int_to_ptr.vmem [resolvable:$true] %s27
      %33 = dma.hbm_to_vmem [thread:$0]  %s0, 512, %s28, [#allocation3], 64, 64, 4
    $region5: #{tpu_custom_call.1} parent=1 // pred_fallthru
      _
    // Predicated region
    $region6: #{tpu_custom_call.1} parent=1 // pred_check
      _
    $region7: #{tpu_custom_call.1} parent=1 // pred_check_branch
      %35 = sbr.rel (0) target = $region9
    $region8: #{tpu_custom_call.1} parent=1 // pred_region
      %s37 = ssub.s32 1024, 1024
      %38 = vsyncadd [#allocation6], %s37
      %s39 = sshll.u32 [#allocation5], 4
      %s40 = int_to_ptr.vmem [resolvable:$true] %s39
      %45 = dma.hbm_to_vmem [thread:$0]  %s1, 1024, %s40, [#allocation6], 128, 128, 8
    $region9: #{tpu_custom_call.1} parent=1 // pred_fallthru
      _
    // Predicated region
    $region10: #{tpu_custom_call.1} parent=1 // pred_check
      _
    $region11: #{tpu_custom_call.1} parent=1 // pred_check_branch
      %47 = sbr.rel (0) target = $region13
    $region12: #{tpu_custom_call.1} parent=1 // pred_region
      %s49 = ssub.s32 128, 128
      %50 = vsyncadd [#allocation6], %s49
      %s52 = sshll.u32 [#allocation7], 4
      %s53 = int_to_ptr.vmem [resolvable:$true] %s52
      %55 = dma.hbm_to_vmem [thread:$0]  %s2, 128, %s53, [#allocation6]
    $region13: #{tpu_custom_call.1} parent=1 // pred_fallthru
      _
    // Predicated region
    $region14: #{tpu_custom_call.1} parent=1 // pred_check
      _
    $region15: #{tpu_custom_call.1} parent=1 // pred_check_branch
      %57 = sbr.rel (0) target = $region17
    $region16: #{tpu_custom_call.1} parent=1 // pred_region
      %s59 = ssub.s32 256, 256
      %60 = vsyncadd [#allocation9], %s59
      %s61 = sshll.u32 [#allocation8], 4
      %s62 = int_to_ptr.vmem [resolvable:$true] %s61
      %67 = dma.hbm_to_vmem [thread:$0]  %s3, 256, %s62, [#allocation9], 64, 64, 4
    $region17: #{tpu_custom_call.1} parent=1 // pred_fallthru
      _
    // Predicated region
    $region18: #{tpu_custom_call.1} parent=1 // pred_check
      _
    $region19: #{tpu_custom_call.1} parent=1 // pred_check_branch
      %69 = sbr.rel (0) target = $region21
    $region20: #{tpu_custom_call.1} parent=1 // pred_region
      %s71 = ssub.s32 256, 256
      %72 = vsyncadd [#allocation9], %s71
      %s73 = sshll.u32 [#allocation10], 4
      %s74 = int_to_ptr.vmem [resolvable:$true] %s73
      %79 = dma.hbm_to_vmem [thread:$0]  %s4, 256, %s74, [#allocation9], 64, 64, 4
    $region21: #{tpu_custom_call.1} parent=1 // pred_fallthru
      _
    // Predicated region
    $region22: #{tpu_custom_call.1} parent=1 // pred_check
      _
    $region23: #{tpu_custom_call.1} parent=1 // pred_check_branch
      %81 = sbr.rel (0) target = $region25
    $region24: #{tpu_custom_call.1} parent=1 // pred_region
      %s83 = ssub.s32 256, 256
      %84 = vsyncadd [#allocation12], %s83
      %s85 = sshll.u32 [#allocation11], 4
      %s86 = int_to_ptr.vmem [resolvable:$true] %s85
      %91 = dma.hbm_to_vmem [thread:$0]  %s5, 256, %s86, [#allocation12], 64, 64, 4
    $region25: #{tpu_custom_call.1} parent=1 // pred_fallthru
      _
    // Predicated region
    $region26: #{tpu_custom_call.1} parent=1 // pred_check
      _
    $region27: #{tpu_custom_call.1} parent=1 // pred_check_branch
      %93 = sbr.rel (0) target = $region29
    $region28: #{tpu_custom_call.1} parent=1 // pred_region
      %s95 = ssub.s32 128, 128
      %96 = vsyncadd [#allocation12], %s95
      %s97 = sshll.u32 [#allocation13], 4
      %s98 = int_to_ptr.vmem [resolvable:$true] %s97
      %103 = dma.hbm_to_vmem [thread:$0]  %s6, 128, %s98, [#allocation12], 64, 64, 4
    $region29: #{tpu_custom_call.1} parent=1 // pred_fallthru
      _
    // Predicated region
    $region30: #{tpu_custom_call.1} parent=1 // pred_check
      _
    $region31: #{tpu_custom_call.1} parent=1 // pred_check_branch
      %105 = sbr.rel (0) target = $region33
    $region32: #{tpu_custom_call.1} parent=1 // pred_region
      %s107 = ssub.s32 256, 256
      %108 = vsyncadd [#allocation15], %s107
      %s109 = sshll.u32 [#allocation14], 4
      %s110 = int_to_ptr.vmem [resolvable:$true] %s109
      %115 = dma.hbm_to_vmem [thread:$0]  %s7, 256, %s110, [#allocation15], 64, 64, 4
    $region33: #{tpu_custom_call.1} parent=1 // pred_fallthru
      _
    // Predicated region
    $region34: #{tpu_custom_call.1} parent=1 // pred_check
      _
    $region35: #{tpu_custom_call.1} parent=1 // pred_check_branch
      %117 = sbr.rel (0) target = $region37
    $region36: #{tpu_custom_call.1} parent=1 // pred_region
      %118 = dma.done [#allocation3], 512
    $region37: #{tpu_custom_call.1} parent=1 // pred_fallthru
      _
    // Predicated region
    $region38: #{tpu_custom_call.1} parent=1 // pred_check
      _
    $region39: #{tpu_custom_call.1} parent=1 // pred_check_branch
      %120 = sbr.rel (0) target = $region41
    $region40: #{tpu_custom_call.1} parent=1 // pred_region
      %121 = dma.done [#allocation6], 1024
    $region41: #{tpu_custom_call.1} parent=1 // pred_fallthru
      _
    // Predicated region
    $region42: #{tpu_custom_call.1} parent=1 // pred_check
      _
    $region43: #{tpu_custom_call.1} parent=1 // pred_check_branch
      %123 = sbr.rel (0) target = $region45
    $region44: #{tpu_custom_call.1} parent=1 // pred_region
      %124 = dma.done [#allocation6], 128
    $region45: #{tpu_custom_call.1} parent=1 // pred_fallthru
      _
    // Predicated region
    $region46: #{tpu_custom_call.1} parent=1 // pred_check
      _
    $region47: #{tpu_custom_call.1} parent=1 // pred_check_branch
      %126 = sbr.rel (0) target = $region49
    $region48: #{tpu_custom_call.1} parent=1 // pred_region
      %127 = dma.done [#allocation9], 256
    $region49: #{tpu_custom_call.1} parent=1 // pred_fallthru
      _
    // Predicated region
    $region50: #{tpu_custom_call.1} parent=1 // pred_check
      _
    $region51: #{tpu_custom_call.1} parent=1 // pred_check_branch
      %129 = sbr.rel (0) target = $region53
    $region52: #{tpu_custom_call.1} parent=1 // pred_region
      %130 = dma.done [#allocation9], 256
    $region53: #{tpu_custom_call.1} parent=1 // pred_fallthru
      _
    // Predicated region
    $region54: #{tpu_custom_call.1} parent=1 // pred_check
      _
    $region55: #{tpu_custom_call.1} parent=1 // pred_check_branch
      %132 = sbr.rel (0) target = $region57
    $region56: #{tpu_custom_call.1} parent=1 // pred_region
      %133 = dma.done [#allocation12], 256
    $region57: #{tpu_custom_call.1} parent=1 // pred_fallthru
      _
    // Predicated region
    $region58: #{tpu_custom_call.1} parent=1 // pred_check
      _
    $region59: #{tpu_custom_call.1} parent=1 // pred_check_branch
      %135 = sbr.rel (0) target = $region61
    $region60: #{tpu_custom_call.1} parent=1 // pred_region
      %136 = dma.done [#allocation12], 128
    $region61: #{tpu_custom_call.1} parent=1 // pred_fallthru
      _
    // Predicated region
    $region62: #{tpu_custom_call.1} parent=1 // pred_check
      _
    $region63: #{tpu_custom_call.1} parent=1 // pred_check_branch
      %138 = sbr.rel (0) target = $region65
    $region64: #{tpu_custom_call.1} parent=1 // pred_region
      %139 = dma.done [#allocation15], 256
    $region65: #{tpu_custom_call.1} parent=1 // pred_fallthru
      _
    %v141 = vld [vmem:[#allocation2] sm:$0xf]
    %v142 = vld [vmem:[#allocation2 + $0x4] sm:$0xf]
    %v143 = vld [vmem:[#allocation2 + $0x8] sm:$0xf]
    %v144 = vld [vmem:[#allocation2 + $0xc] sm:$0xf]
    %v145 = vld [vmem:[#allocation2 + $0x10] sm:$0xf]
    %v146 = vld [vmem:[#allocation2 + $0x14] sm:$0xf]
    %v147 = vld [vmem:[#allocation2 + $0x18] sm:$0xf]
    %v148 = vld [vmem:[#allocation2 + $0x1c] sm:$0xf]
    %v149 = vld [vmem:[#allocation8] sm:$0xf]
    %v150 = vld [vmem:[#allocation8 + $0x4] sm:$0xf]
    %v151 = vld [vmem:[#allocation8 + $0x8] sm:$0xf]
    %v152 = vld [vmem:[#allocation8 + $0xc] sm:$0xf]
    %v161 = vunpack.c.l.b16 %v141
    %v162 = vunpack.c.l.b16 %v142
    %v163 = vunpack.c.l.b16 %v143
    %v164 = vunpack.c.l.b16 %v144
    %v165 = vunpack.c.l.b16 %v145
    %v166 = vunpack.c.l.b16 %v146
    %v167 = vunpack.c.l.b16 %v147
    %v168 = vunpack.c.l.b16 %v148
    %v169 = vpack.c.b16 %v162, %v161
    %v170 = vpack.c.b16 %v164, %v163
    %v171 = vpack.c.b16 %v166, %v165
    %v172 = vpack.c.b16 %v168, %v167
    %v177 = vunpack.c.l.b16 %v149
    %v178 = vunpack.c.l.b16 %v150
    %v179 = vunpack.c.l.b16 %v151
    %v180 = vunpack.c.l.b16 %v152
    %v181 = vpack.c.b16 %v178, %v177
    %v182 = vpack.c.b16 %v180, %v179
    %vm185 = vcmask 261120
    %v187 = vsel %vm185, %v169, 0
    %v190 = vsel %vm185, %v170, 0
    %v193 = vsel %vm185, %v171, 0
    %v196 = vsel %vm185, %v172, 0
    %198 = vmatprep.subr.bf16.mxu0 0
    %199 = vmatpush1.bf16.msra.mxu0 %v181
    %200 = vmatprep.subr.bf16.mxu0 0
    %201 = vmatpush1.bf16.msra.mxu0 %v182
    %202 = vmatprep.subr.bf16.mxu0 0
    %203 = vmatpush1.bf16.msra.mxu0 0
    %204 = vmatprep.subr.bf16.mxu0 0
    %205 = vmatpush1.bf16.msra.mxu0 0
    %206 = vmatprep.subr.bf16.mxu0 0
    %207 = vmatpush1.bf16.msra.mxu0 0
    %208 = vmatprep.subr.bf16.mxu0 0
    %209 = vmatpush1.bf16.msra.mxu0 0
    %210 = vmatprep.subr.bf16.mxu0 0
    %211 = vmatpush1.bf16.msra.mxu0 0
    %212 = vmatprep.subr.bf16.mxu0 0
    %213 = vmatpush1.bf16.msra.mxu0 0
    %214 = vmatprep.subr.bf16.mxu0 0
    %215 = vmatpush1.bf16.msra.mxu0 0
    %216 = vmatprep.subr.bf16.mxu0 0
    %217 = vmatpush1.bf16.msra.mxu0 0
    %218 = vmatprep.subr.bf16.mxu0 0
    %219 = vmatpush1.bf16.msra.mxu0 0
    %220 = vmatprep.subr.bf16.mxu0 0
    %221 = vmatpush1.bf16.msra.mxu0 0
    %222 = vmatprep.subr.bf16.mxu0 0
    %223 = vmatpush1.bf16.msra.mxu0 0
    %224 = vmatprep.subr.bf16.mxu0 0
    %225 = vmatpush1.bf16.msra.mxu0 0
    %226 = vmatprep.subr.bf16.mxu0 0
    %227 = vmatpush1.bf16.msra.mxu0 0
    %228 = vmatprep.subr.bf16.mxu0 0
    %229 = vmatpush1.bf16.msra.mxu0 0
    %230 = vmatprep.mubr.bf16.mxu0 0
    %231 = vmatmul.mubr.bf16.gmra.mrb[0].mxu0 %v187
    %v232 = vpop.f32.mrb[0].mxu0
    %v233 = vadd.f32 0.0, %v232
    %v234 = vpop.f32.mrb[0].mxu0
    %v235 = vpop.f32.mrb[0].mxu0
    %v236 = vadd.f32 0.0, %v235
    %v237 = vpop.f32.mrb[0].mxu0
    %238 = vmatprep.mubr.bf16.mxu0 0
    %239 = vmatmul.mubr.bf16.gmra.mrb[0].mxu0 %v190
    %v240 = vpop.f32.mrb[0].mxu0
    %v241 = vadd.f32 0.0, %v240
    %v242 = vpop.f32.mrb[0].mxu0
    %v243 = vpop.f32.mrb[0].mxu0
    %v244 = vadd.f32 0.0, %v243
    %v245 = vpop.f32.mrb[0].mxu0
    %246 = vmatprep.mubr.bf16.mxu0 0
    %247 = vmatmul.mubr.bf16.gmra.mrb[0].mxu0 %v193
    %v248 = vpop.f32.mrb[0].mxu0
    %v249 = vadd.f32 0.0, %v248
    %v250 = vpop.f32.mrb[0].mxu0
    %v251 = vpop.f32.mrb[0].mxu0
    %v252 = vadd.f32 0.0, %v251
    %v253 = vpop.f32.mrb[0].mxu0
    %254 = vmatprep.mubr.bf16.mxu0 0
    %255 = vmatmul.mubr.bf16.gmra.mrb[0].mxu0 %v196
    %v256 = vpop.f32.mrb[0].mxu0
    %v257 = vadd.f32 0.0, %v256
    %v258 = vpop.f32.mrb[0].mxu0
    %v259 = vpop.f32.mrb[0].mxu0
    %v260 = vadd.f32 0.0, %v259
    %v261 = vpop.f32.mrb[0].mxu0
    %262 = vdwg.mxu0
    %v263 = vsel %vm185, %v233, 0.0
    %v264 = vsel %vm185, %v236, 0.0
    %v265 = vadd.f32 %v263, %v264
    %v266 = vsel %vm185, %v241, 0.0
    %v267 = vadd.f32 %v265, %v266
    %v268 = vsel %vm185, %v244, 0.0
    %v269 = vadd.f32 %v267, %v268
    %v270 = vsel %vm185, %v249, 0.0
    %v271 = vadd.f32 %v269, %v270
    %v272 = vsel %vm185, %v252, 0.0
    %v273 = vadd.f32 %v271, %v272
    %v274 = vsel %vm185, %v257, 0.0
    %v275 = vadd.f32 %v273, %v274
    %v276 = vsel %vm185, %v260, 0.0
    %v277 = vadd.f32 %v275, %v276
    %v278 = vrot.slane %v277, 4
    %v279 = vadd.f32 %v277, %v278
    %v280 = vrot.slane %v279, 2
    %v281 = vadd.f32 %v279, %v280
    %v282 = vrot.slane %v281, 1
    %v283 = vadd.f32 %v281, %v282
    %v284 = vmul.f32 %v283, 0.015625
    %v285 = vsub.f32 %v233, %v284
    %v286 = vsub.f32 %v236, %v284
    %v287 = vsub.f32 %v241, %v284
    %v288 = vsub.f32 %v244, %v284
    %v289 = vsub.f32 %v249, %v284
    %v290 = vsub.f32 %v252, %v284
    %v291 = vsub.f32 %v257, %v284
    %v292 = vsub.f32 %v260, %v284
    %v293 = vmul.f32 %v285, %v285
    %v294 = vmul.f32 %v286, %v286
    %v295 = vmul.f32 %v287, %v287
    %v296 = vmul.f32 %v288, %v288
    %v297 = vmul.f32 %v289, %v289
    %v298 = vmul.f32 %v290, %v290
    %v299 = vmul.f32 %v291, %v291
    %v300 = vmul.f32 %v292, %v292
    %v301 = vsel %vm185, %v293, 0.0
    %v302 = vsel %vm185, %v294, 0.0
    %v303 = vadd.f32 %v301, %v302
    %v304 = vsel %vm185, %v295, 0.0
    %v305 = vadd.f32 %v303, %v304
    %v306 = vsel %vm185, %v296, 0.0
    %v307 = vadd.f32 %v305, %v306
    %v308 = vsel %vm185, %v297, 0.0
    %v309 = vadd.f32 %v307, %v308
    %v310 = vsel %vm185, %v298, 0.0
    %v311 = vadd.f32 %v309, %v310
    %v312 = vsel %vm185, %v299, 0.0
    %v313 = vadd.f32 %v311, %v312
    %v314 = vsel %vm185, %v300, 0.0
    %v315 = vadd.f32 %v313, %v314
    %v316 = vrot.slane %v315, 4
    %v317 = vadd.f32 %v315, %v316
    %v318 = vrot.slane %v317, 2
    %v319 = vadd.f32 %v317, %v318
    %v320 = vrot.slane %v319, 1
    %v321 = vadd.f32 %v319, %v320
    %v322 = vmul.f32 %v321, 0.015625
    %v323 = vld [vmem:[#allocation7] sm:$0x1]
    %v324 = vld [vmem:[#allocation7 + $0x1] sm:$0x1]
    %v325 = vadd.f32 %v322, 1e-05
    %v326 = vrsqrt.pop %v325
    %v327 = vmul.f32 %v285, %v326
    %v328 = vmul.f32 %v286, %v326
    %v329 = vmul.f32 %v287, %v326
    %v330 = vmul.f32 %v288, %v326
    %v331 = vmul.f32 %v289, %v326
    %v332 = vmul.f32 %v290, %v326
    %v333 = vmul.f32 %v291, %v326
    %v334 = vmul.f32 %v292, %v326
    %v335 = vlaneseq
    %v336 = vshrl.u32 %v335, 7
    %v337 = vsub.s32 0, %v336
    %v338 = vrot.slane %v323, %v337
    %v339 = vmul.f32 %v327, %v338
    %v340 = vmul.f32 %v328, %v338
    %v341 = vmul.f32 %v329, %v338
    %v342 = vmul.f32 %v330, %v338
    %v343 = vmul.f32 %v331, %v338
    %v344 = vmul.f32 %v332, %v338
    %v345 = vmul.f32 %v333, %v338
    %v346 = vmul.f32 %v334, %v338
    %v347 = vlaneseq
    %v348 = vshrl.u32 %v347, 7
    %v349 = vsub.s32 0, %v348
    %v350 = vrot.slane %v324, %v349
    %v351 = vadd.f32 %v339, %v350
    %v352 = vadd.f32 %v340, %v350
    %v353 = vadd.f32 %v341, %v350
    %v354 = vadd.f32 %v342, %v350
    %v355 = vadd.f32 %v343, %v350
    %v356 = vadd.f32 %v344, %v350
    %v357 = vadd.f32 %v345, %v350
    %v358 = vadd.f32 %v346, %v350
    %vm359 = vcmp.gt.f32.partialorder %v351, 0.0
    %vm360 = vcmp.gt.f32.partialorder %v352, 0.0
    %vm361 = vcmp.gt.f32.partialorder %v353, 0.0
    %vm362 = vcmp.gt.f32.partialorder %v354, 0.0
    %vm363 = vcmp.gt.f32.partialorder %v355, 0.0
    %vm364 = vcmp.gt.f32.partialorder %v356, 0.0
    %vm365 = vcmp.gt.f32.partialorder %v357, 0.0
    %vm366 = vcmp.gt.f32.partialorder %v358, 0.0
    %v367 = vmin.f32 %v351, 0.0
    %v368 = vmin.f32 %v352, 0.0
    %v369 = vmin.f32 %v353, 0.0
    %v370 = vmin.f32 %v354, 0.0
    %v371 = vmin.f32 %v355, 0.0
    %v372 = vmin.f32 %v356, 0.0
    %v373 = vmin.f32 %v357, 0.0
    %v374 = vmin.f32 %v358, 0.0
    %v375 = vmul.f32 %v367, 1.442695
    %v376 = vpow.pop %v375
    %v377 = vmul.f32 %v368, 1.442695
    %v378 = vpow.pop %v377
    %v379 = vmul.f32 %v369, 1.442695
    %v380 = vpow.pop %v379
    %v381 = vmul.f32 %v370, 1.442695
    %v382 = vpow.pop %v381
    %v383 = vmul.f32 %v371, 1.442695
    %v384 = vpow.pop %v383
    %v385 = vmul.f32 %v372, 1.442695
    %v386 = vpow.pop %v385
    %v387 = vmul.f32 %v373, 1.442695
    %v388 = vpow.pop %v387
    %v389 = vmul.f32 %v374, 1.442695
    %v390 = vpow.pop %v389
    %v391 = vsub.f32 %v376, 1.0
    %v392 = vsub.f32 %v378, 1.0
    %v393 = vsub.f32 %v380, 1.0
    %v394 = vsub.f32 %v382, 1.0
    %v395 = vsub.f32 %v384, 1.0
    %v396 = vsub.f32 %v386, 1.0
    %v397 = vsub.f32 %v388, 1.0
    %v398 = vsub.f32 %v390, 1.0
    %v399 = vsel %vm359, %v351, %v391
    %v400 = vsel %vm360, %v352, %v392
    %v401 = vsel %vm361, %v353, %v393
    %v402 = vsel %vm362, %v354, %v394
    %v403 = vsel %vm363, %v355, %v395
    %v404 = vsel %vm364, %v356, %v396
    %v405 = vsel %vm365, %v357, %v397
    %v406 = vsel %vm366, %v358, %v398
    %v407 = vpack.c.bf16 %v400, %v399
    %v408 = vpack.c.bf16 %v402, %v401
    %v409 = vpack.c.bf16 %v404, %v403
    %v410 = vpack.c.bf16 %v406, %v405
    %v411 = vld [vmem:[#allocation10] sm:$0xf]
    %v412 = vld [vmem:[#allocation10 + $0x4] sm:$0xf]
    %v413 = vld [vmem:[#allocation10 + $0x8] sm:$0xf]
    %v414 = vld [vmem:[#allocation10 + $0xc] sm:$0xf]
    %v419 = vunpack.c.l.b16 %v411
    %v420 = vunpack.c.l.b16 %v412
    %v421 = vunpack.c.l.b16 %v413
    %v422 = vunpack.c.l.b16 %v414
    %v423 = vpack.c.b16 %v420, %v419
    %v424 = vpack.c.b16 %v422, %v421
    %v428 = vsel %vm185, %v407, 0
    %v431 = vsel %vm185, %v408, 0
    %v434 = vsel %vm185, %v409, 0
    %v437 = vsel %vm185, %v410, 0
    %439 = vmatprep.subr.bf16.mxu0 0
    %440 = vmatpush1.bf16.msra.mxu0 %v423
    %441 = vmatprep.subr.bf16.mxu0 0
    %442 = vmatpush1.bf16.msra.mxu0 %v424
    %443 = vmatprep.subr.bf16.mxu0 0
    %444 = vmatpush1.bf16.msra.mxu0 0
    %445 = vmatprep.subr.bf16.mxu0 0
    %446 = vmatpush1.bf16.msra.mxu0 0
    %447 = vmatprep.subr.bf16.mxu0 0
    %448 = vmatpush1.bf16.msra.mxu0 0
    %449 = vmatprep.subr.bf16.mxu0 0
    %450 = vmatpush1.bf16.msra.mxu0 0
    %451 = vmatprep.subr.bf16.mxu0 0
    %452 = vmatpush1.bf16.msra.mxu0 0
    %453 = vmatprep.subr.bf16.mxu0 0
    %454 = vmatpush1.bf16.msra.mxu0 0
    %455 = vmatprep.subr.bf16.mxu0 0
    %456 = vmatpush1.bf16.msra.mxu0 0
    %457 = vmatprep.subr.bf16.mxu0 0
    %458 = vmatpush1.bf16.msra.mxu0 0
    %459 = vmatprep.subr.bf16.mxu0 0
    %460 = vmatpush1.bf16.msra.mxu0 0
    %461 = vmatprep.subr.bf16.mxu0 0
    %462 = vmatpush1.bf16.msra.mxu0 0
    %463 = vmatprep.subr.bf16.mxu0 0
    %464 = vmatpush1.bf16.msra.mxu0 0
    %465 = vmatprep.subr.bf16.mxu0 0
    %466 = vmatpush1.bf16.msra.mxu0 0
    %467 = vmatprep.subr.bf16.mxu0 0
    %468 = vmatpush1.bf16.msra.mxu0 0
    %469 = vmatprep.subr.bf16.mxu0 0
    %470 = vmatpush1.bf16.msra.mxu0 0
    %471 = vmatprep.mubr.bf16.mxu0 0
    %472 = vmatmul.mubr.bf16.gmra.mrb[0].mxu0 %v428
    %v473 = vpop.f32.mrb[0].mxu0
    %v474 = vadd.f32 0.0, %v473
    %v475 = vpop.f32.mrb[0].mxu0
    %v476 = vpop.f32.mrb[0].mxu0
    %v477 = vadd.f32 0.0, %v476
    %v478 = vpop.f32.mrb[0].mxu0
    %479 = vmatprep.mubr.bf16.mxu0 0
    %480 = vmatmul.mubr.bf16.gmra.mrb[0].mxu0 %v431
    %v481 = vpop.f32.mrb[0].mxu0
    %v482 = vadd.f32 0.0, %v481
    %v483 = vpop.f32.mrb[0].mxu0
    %v484 = vpop.f32.mrb[0].mxu0
    %v485 = vadd.f32 0.0, %v484
    %v486 = vpop.f32.mrb[0].mxu0
    %487 = vmatprep.mubr.bf16.mxu0 0
    %488 = vmatmul.mubr.bf16.gmra.mrb[0].mxu0 %v434
    %v489 = vpop.f32.mrb[0].mxu0
    %v490 = vadd.f32 0.0, %v489
    %v491 = vpop.f32.mrb[0].mxu0
    %v492 = vpop.f32.mrb[0].mxu0
    %v493 = vadd.f32 0.0, %v492
    %v494 = vpop.f32.mrb[0].mxu0
    %495 = vmatprep.mubr.bf16.mxu0 0
    %496 = vmatmul.mubr.bf16.gmra.mrb[0].mxu0 %v437
    %v497 = vpop.f32.mrb[0].mxu0
    %v498 = vadd.f32 0.0, %v497
    %v499 = vpop.f32.mrb[0].mxu0
    %v500 = vpop.f32.mrb[0].mxu0
    %v501 = vadd.f32 0.0, %v500
    %v502 = vpop.f32.mrb[0].mxu0
    %503 = vdwg.mxu0
    %vm504 = vcmask 130048
    %v505 = vsel %vm504, %v474, 0.0
    %v506 = vsel %vm504, %v477, 0.0
    %v507 = vadd.f32 %v505, %v506
    %v508 = vsel %vm504, %v482, 0.0
    %v509 = vadd.f32 %v507, %v508
    %v510 = vsel %vm504, %v485, 0.0
    %v511 = vadd.f32 %v509, %v510
    %v512 = vsel %vm504, %v490, 0.0
    %v513 = vadd.f32 %v511, %v512
    %v514 = vsel %vm504, %v493, 0.0
    %v515 = vadd.f32 %v513, %v514
    %v516 = vsel %vm504, %v498, 0.0
    %v517 = vadd.f32 %v515, %v516
    %v518 = vsel %vm504, %v501, 0.0
    %v519 = vadd.f32 %v517, %v518
    %v520 = vrot.slane %v519, 4
    %v521 = vadd.f32 %v519, %v520
    %v522 = vrot.slane %v521, 2
    %v523 = vadd.f32 %v521, %v522
    %v524 = vrot.slane %v523, 1
    %v525 = vadd.f32 %v523, %v524
    %v526 = vmul.f32 %v525, 0.015625
    %v527 = vsub.f32 %v474, %v526
    %v528 = vsub.f32 %v477, %v526
    %v529 = vsub.f32 %v482, %v526
    %v530 = vsub.f32 %v485, %v526
    %v531 = vsub.f32 %v490, %v526
    %v532 = vsub.f32 %v493, %v526
    %v533 = vsub.f32 %v498, %v526
    %v534 = vsub.f32 %v501, %v526
    %v535 = vmul.f32 %v527, %v527
    %v536 = vmul.f32 %v528, %v528
    %v537 = vmul.f32 %v529, %v529
    %v538 = vmul.f32 %v530, %v530
    %v539 = vmul.f32 %v531, %v531
    %v540 = vmul.f32 %v532, %v532
    %v541 = vmul.f32 %v533, %v533
    %v542 = vmul.f32 %v534, %v534
    %v543 = vsel %vm504, %v535, 0.0
    %v544 = vsel %vm504, %v536, 0.0
    %v545 = vadd.f32 %v543, %v544
    %v546 = vsel %vm504, %v537, 0.0
    %v547 = vadd.f32 %v545, %v546
    %v548 = vsel %vm504, %v538, 0.0
    %v549 = vadd.f32 %v547, %v548
    %v550 = vsel %vm504, %v539, 0.0
    %v551 = vadd.f32 %v549, %v550
    %v552 = vsel %vm504, %v540, 0.0
    %v553 = vadd.f32 %v551, %v552
    %v554 = vsel %vm504, %v541, 0.0
    %v555 = vadd.f32 %v553, %v554
    %v556 = vsel %vm504, %v542, 0.0
    %v557 = vadd.f32 %v555, %v556
    %v558 = vrot.slane %v557, 4
    %v559 = vadd.f32 %v557, %v558
    %v560 = vrot.slane %v559, 2
    %v561 = vadd.f32 %v559, %v560
    %v562 = vrot.slane %v561, 1
    %v563 = vadd.f32 %v561, %v562
    %v564 = vmul.f32 %v563, 0.015625
    %v565 = vld [vmem:[#allocation7 + $0x2] sm:$0x1]
    %v566 = vld [vmem:[#allocation7 + $0x3] sm:$0x1]
    %v567 = vadd.f32 %v564, 1e-05
    %v568 = vrsqrt.pop %v567
    %v569 = vmul.f32 %v527, %v568
    %v570 = vmul.f32 %v528, %v568
    %v571 = vmul.f32 %v529, %v568
    %v572 = vmul.f32 %v530, %v568
    %v573 = vmul.f32 %v531, %v568
    %v574 = vmul.f32 %v532, %v568
    %v575 = vmul.f32 %v533, %v568
    %v576 = vmul.f32 %v534, %v568
    %v577 = vlaneseq
    %v578 = vshrl.u32 %v577, 7
    %v579 = vsub.s32 0, %v578
    %v580 = vrot.slane %v565, %v579
    %v581 = vmul.f32 %v569, %v580
    %v582 = vmul.f32 %v570, %v580
    %v583 = vmul.f32 %v571, %v580
    %v584 = vmul.f32 %v572, %v580
    %v585 = vmul.f32 %v573, %v580
    %v586 = vmul.f32 %v574, %v580
    %v587 = vmul.f32 %v575, %v580
    %v588 = vmul.f32 %v576, %v580
    %v589 = vlaneseq
    %v590 = vshrl.u32 %v589, 7
    %v591 = vsub.s32 0, %v590
    %v592 = vrot.slane %v566, %v591
    %v593 = vadd.f32 %v581, %v592
    %v594 = vadd.f32 %v582, %v592
    %v595 = vadd.f32 %v583, %v592
    %v596 = vadd.f32 %v584, %v592
    %v597 = vadd.f32 %v585, %v592
    %v598 = vadd.f32 %v586, %v592
    %v599 = vadd.f32 %v587, %v592
    %v600 = vadd.f32 %v588, %v592
    %v601 = vld [vmem:[#allocation11] sm:$0xf]
    %v602 = vld [vmem:[#allocation11 + $0x4] sm:$0xf]
    %v603 = vld [vmem:[#allocation11 + $0x8] sm:$0xf]
    %v604 = vld [vmem:[#allocation11 + $0xc] sm:$0xf]
    %v609 = vunpack.c.l.b16 %v601
    %v610 = vunpack.c.l.b16 %v602
    %v611 = vunpack.c.l.b16 %v603
    %v612 = vunpack.c.l.b16 %v604
    %v613 = vpack.c.b16 %v610, %v609
    %v614 = vpack.c.b16 %v612, %v611
    %617 = vmatprep.subr.bf16.mxu0 0
    %618 = vmatpush1.bf16.msra.mxu0 %v613
    %619 = vmatprep.subr.bf16.mxu0 0
    %620 = vmatpush1.bf16.msra.mxu0 %v614
    %621 = vmatprep.subr.bf16.mxu0 0
    %622 = vmatpush1.bf16.msra.mxu0 0
    %623 = vmatprep.subr.bf16.mxu0 0
    %624 = vmatpush1.bf16.msra.mxu0 0
    %625 = vmatprep.subr.bf16.mxu0 0
    %626 = vmatpush1.bf16.msra.mxu0 0
    %627 = vmatprep.subr.bf16.mxu0 0
    %628 = vmatpush1.bf16.msra.mxu0 0
    %629 = vmatprep.subr.bf16.mxu0 0
    %630 = vmatpush1.bf16.msra.mxu0 0
    %631 = vmatprep.subr.bf16.mxu0 0
    %632 = vmatpush1.bf16.msra.mxu0 0
    %633 = vmatprep.subr.bf16.mxu0 0
    %634 = vmatpush1.bf16.msra.mxu0 0
    %635 = vmatprep.subr.bf16.mxu0 0
    %636 = vmatpush1.bf16.msra.mxu0 0
    %637 = vmatprep.subr.bf16.mxu0 0
    %638 = vmatpush1.bf16.msra.mxu0 0
    %639 = vmatprep.subr.bf16.mxu0 0
    %640 = vmatpush1.bf16.msra.mxu0 0
    %641 = vmatprep.subr.bf16.mxu0 0
    %642 = vmatpush1.bf16.msra.mxu0 0
    %643 = vmatprep.subr.bf16.mxu0 0
    %644 = vmatpush1.bf16.msra.mxu0 0
    %645 = vmatprep.subr.bf16.mxu0 0
    %646 = vmatpush1.bf16.msra.mxu0 0
    %647 = vmatprep.subr.bf16.mxu0 0
    %648 = vmatpush1.bf16.msra.mxu0 0
    %649 = vmatprep.mubr.bf16.mxu0 0
    %650 = vmatmul.mubr.bf16.gmra.mrb[0].mxu0 %v428
    %v651 = vpop.f32.mrb[0].mxu0
    %v652 = vadd.f32 0.0, %v651
    %v653 = vpop.f32.mrb[0].mxu0
    %v654 = vpop.f32.mrb[0].mxu0
    %v655 = vadd.f32 0.0, %v654
    %v656 = vpop.f32.mrb[0].mxu0
    %657 = vmatprep.mubr.bf16.mxu0 0
    %658 = vmatmul.mubr.bf16.gmra.mrb[0].mxu0 %v431
    %v659 = vpop.f32.mrb[0].mxu0
    %v660 = vadd.f32 0.0, %v659
    %v661 = vpop.f32.mrb[0].mxu0
    %v662 = vpop.f32.mrb[0].mxu0
    %v663 = vadd.f32 0.0, %v662
    %v664 = vpop.f32.mrb[0].mxu0
    %665 = vmatprep.mubr.bf16.mxu0 0
    %666 = vmatmul.mubr.bf16.gmra.mrb[0].mxu0 %v434
    %v667 = vpop.f32.mrb[0].mxu0
    %v668 = vadd.f32 0.0, %v667
    %v669 = vpop.f32.mrb[0].mxu0
    %v670 = vpop.f32.mrb[0].mxu0
    %v671 = vadd.f32 0.0, %v670
    %v672 = vpop.f32.mrb[0].mxu0
    %673 = vmatprep.mubr.bf16.mxu0 0
    %674 = vmatmul.mubr.bf16.gmra.mrb[0].mxu0 %v437
    %v675 = vpop.f32.mrb[0].mxu0
    %v676 = vadd.f32 0.0, %v675
    %v677 = vpop.f32.mrb[0].mxu0
    %v678 = vpop.f32.mrb[0].mxu0
    %v679 = vadd.f32 0.0, %v678
    %v680 = vpop.f32.mrb[0].mxu0
    %681 = vdwg.mxu0
    %v682 = vsel %vm504, %v652, 0.0
    %v683 = vsel %vm504, %v655, 0.0
    %v684 = vadd.f32 %v682, %v683
    %v685 = vsel %vm504, %v660, 0.0
    %v686 = vadd.f32 %v684, %v685
    %v687 = vsel %vm504, %v663, 0.0
    %v688 = vadd.f32 %v686, %v687
    %v689 = vsel %vm504, %v668, 0.0
    %v690 = vadd.f32 %v688, %v689
    %v691 = vsel %vm504, %v671, 0.0
    %v692 = vadd.f32 %v690, %v691
    %v693 = vsel %vm504, %v676, 0.0
    %v694 = vadd.f32 %v692, %v693
    %v695 = vsel %vm504, %v679, 0.0
    %v696 = vadd.f32 %v694, %v695
    %v697 = vrot.slane %v696, 4
    %v698 = vadd.f32 %v696, %v697
    %v699 = vrot.slane %v698, 2
    %v700 = vadd.f32 %v698, %v699
    %v701 = vrot.slane %v700, 1
    %v702 = vadd.f32 %v700, %v701
    %v703 = vmul.f32 %v702, 0.015625
    %v704 = vsub.f32 %v652, %v703
    %v705 = vsub.f32 %v655, %v703
    %v706 = vsub.f32 %v660, %v703
    %v707 = vsub.f32 %v663, %v703
    %v708 = vsub.f32 %v668, %v703
    %v709 = vsub.f32 %v671, %v703
    %v710 = vsub.f32 %v676, %v703
    %v711 = vsub.f32 %v679, %v703
    %v712 = vmul.f32 %v704, %v704
    %v713 = vmul.f32 %v705, %v705
    %v714 = vmul.f32 %v706, %v706
    %v715 = vmul.f32 %v707, %v707
    %v716 = vmul.f32 %v708, %v708
    %v717 = vmul.f32 %v709, %v709
    %v718 = vmul.f32 %v710, %v710
    %v719 = vmul.f32 %v711, %v711
    %v720 = vsel %vm504, %v712, 0.0
    %v721 = vsel %vm504, %v713, 0.0
    %v722 = vadd.f32 %v720, %v721
    %v723 = vsel %vm504, %v714, 0.0
    %v724 = vadd.f32 %v722, %v723
    %v725 = vsel %vm504, %v715, 0.0
    %v726 = vadd.f32 %v724, %v725
    %v727 = vsel %vm504, %v716, 0.0
    %v728 = vadd.f32 %v726, %v727
    %v729 = vsel %vm504, %v717, 0.0
    %v730 = vadd.f32 %v728, %v729
    %v731 = vsel %vm504, %v718, 0.0
    %v732 = vadd.f32 %v730, %v731
    %v733 = vsel %vm504, %v719, 0.0
    %v734 = vadd.f32 %v732, %v733
    %v735 = vrot.slane %v734, 4
    %v736 = vadd.f32 %v734, %v735
    %v737 = vrot.slane %v736, 2
    %v738 = vadd.f32 %v736, %v737
    %v739 = vrot.slane %v738, 1
    %v740 = vadd.f32 %v738, %v739
    %v741 = vmul.f32 %v740, 0.015625
    %v742 = vld [vmem:[#allocation7 + $0x4] sm:$0x1]
    %v743 = vld [vmem:[#allocation7 + $0x5] sm:$0x1]
    %v744 = vadd.f32 %v741, 1e-05
    %v745 = vrsqrt.pop %v744
    %v746 = vmul.f32 %v704, %v745
    %v747 = vmul.f32 %v705, %v745
    %v748 = vmul.f32 %v706, %v745
    %v749 = vmul.f32 %v707, %v745
    %v750 = vmul.f32 %v708, %v745
    %v751 = vmul.f32 %v709, %v745
    %v752 = vmul.f32 %v710, %v745
    %v753 = vmul.f32 %v711, %v745
    %v754 = vlaneseq
    %v755 = vshrl.u32 %v754, 7
    %v756 = vsub.s32 0, %v755
    %v757 = vrot.slane %v742, %v756
    %v758 = vmul.f32 %v746, %v757
    %v759 = vmul.f32 %v747, %v757
    %v760 = vmul.f32 %v748, %v757
    %v761 = vmul.f32 %v749, %v757
    %v762 = vmul.f32 %v750, %v757
    %v763 = vmul.f32 %v751, %v757
    %v764 = vmul.f32 %v752, %v757
    %v765 = vmul.f32 %v753, %v757
    %v766 = vlaneseq
    %v767 = vshrl.u32 %v766, 7
    %v768 = vsub.s32 0, %v767
    %v769 = vrot.slane %v743, %v768
    %v770 = vadd.f32 %v758, %v769
    %v771 = vadd.f32 %v759, %v769
    %v772 = vadd.f32 %v760, %v769
    %v773 = vadd.f32 %v761, %v769
    %v774 = vadd.f32 %v762, %v769
    %v775 = vadd.f32 %v763, %v769
    %v776 = vadd.f32 %v764, %v769
    %v777 = vadd.f32 %v765, %v769
    %v778 = vmul.f32 %v770, 0.5
    %v779 = vmul.f32 %v771, 0.5
    %v780 = vmul.f32 %v772, 0.5
    %v781 = vmul.f32 %v773, 0.5
    %v782 = vmul.f32 %v774, 0.5
    %v783 = vmul.f32 %v775, 0.5
    %v784 = vmul.f32 %v776, 0.5
    %v785 = vmul.f32 %v777, 0.5
    %v786 = vmul.f32 %v778, 1.442695
    %v787 = vpow.pop %v786
    %v788 = vmul.f32 %v779, 1.442695
    %v789 = vpow.pop %v788
    %v790 = vmul.f32 %v780, 1.442695
    %v791 = vpow.pop %v790
    %v792 = vmul.f32 %v781, 1.442695
    %v793 = vpow.pop %v792
    %v794 = vmul.f32 %v782, 1.442695
    %v795 = vpow.pop %v794
    %v796 = vmul.f32 %v783, 1.442695
    %v797 = vpow.pop %v796
    %v798 = vmul.f32 %v784, 1.442695
    %v799 = vpow.pop %v798
    %v800 = vmul.f32 %v785, 1.442695
    %v801 = vpow.pop %v800
    %v802 = vld [vmem:[#allocation5] sm:$0xff]
    %v803 = vld [vmem:[#allocation5 + $0x8] sm:$0xff]
    %v804 = vld [vmem:[#allocation5 + $0x10] sm:$0xff]
    %v805 = vld [vmem:[#allocation5 + $0x18] sm:$0xff]
    %v806 = vld [vmem:[#allocation5 + $0x20] sm:$0xff]
    %v807 = vld [vmem:[#allocation5 + $0x28] sm:$0xff]
    %v808 = vld [vmem:[#allocation5 + $0x30] sm:$0xff]
    %v809 = vld [vmem:[#allocation5 + $0x38] sm:$0xff]
    %v810 = vmul.f32 %v787, %v802
    %v811 = vmul.f32 %v789, %v803
    %v812 = vmul.f32 %v791, %v804
    %v813 = vmul.f32 %v793, %v805
    %v814 = vmul.f32 %v795, %v806
    %v815 = vmul.f32 %v797, %v807
    %v816 = vmul.f32 %v799, %v808
    %v817 = vmul.f32 %v801, %v809
    %v818 = vadd.f32 %v593, %v810
    %v819 = vadd.f32 %v594, %v811
    %v820 = vadd.f32 %v595, %v812
    %v821 = vadd.f32 %v596, %v813
    %v822 = vadd.f32 %v597, %v814
    %v823 = vadd.f32 %v598, %v815
    %v824 = vadd.f32 %v599, %v816
    %v825 = vadd.f32 %v600, %v817
    %v826 = vpack.c.bf16 %v819, %v818
    %v827 = vpack.c.bf16 %v821, %v820
    %v828 = vpack.c.bf16 %v823, %v822
    %v829 = vpack.c.bf16 %v825, %v824
    %v830 = vld [vmem:[#allocation13] sm:$0xf]
    %v831 = vld [vmem:[#allocation13 + $0x4] sm:$0xf]
    %v834 = vunpack.c.l.b16 %v830
    %v835 = vunpack.c.l.b16 %v831
    %v836 = vpack.c.b16 %v835, %v834
    %v839 = vsel %vm504, %v826, 0
    %v842 = vsel %vm504, %v827, 0
    %v845 = vsel %vm504, %v828, 0
    %v848 = vsel %vm504, %v829, 0
    %850 = vmatprep.subr.bf16.mxu0 0
    %851 = vmatpush1.bf16.msra.mxu0 %v836
    %852 = vmatprep.subr.bf16.mxu0 0
    %853 = vmatpush1.bf16.msra.mxu0 0
    %854 = vmatprep.subr.bf16.mxu0 0
    %855 = vmatpush1.bf16.msra.mxu0 0
    %856 = vmatprep.subr.bf16.mxu0 0
    %857 = vmatpush1.bf16.msra.mxu0 0
    %858 = vmatprep.subr.bf16.mxu0 0
    %859 = vmatpush1.bf16.msra.mxu0 0
    %860 = vmatprep.subr.bf16.mxu0 0
    %861 = vmatpush1.bf16.msra.mxu0 0
    %862 = vmatprep.subr.bf16.mxu0 0
    %863 = vmatpush1.bf16.msra.mxu0 0
    %864 = vmatprep.subr.bf16.mxu0 0
    %865 = vmatpush1.bf16.msra.mxu0 0
    %866 = vmatprep.subr.bf16.mxu0 0
    %867 = vmatpush1.bf16.msra.mxu0 0
    %868 = vmatprep.subr.bf16.mxu0 0
    %869 = vmatpush1.bf16.msra.mxu0 0
    %870 = vmatprep.subr.bf16.mxu0 0
    %871 = vmatpush1.bf16.msra.mxu0 0
    %872 = vmatprep.subr.bf16.mxu0 0
    %873 = vmatpush1.bf16.msra.mxu0 0
    %874 = vmatprep.subr.bf16.mxu0 0
    %875 = vmatpush1.bf16.msra.mxu0 0
    %876 = vmatprep.subr.bf16.mxu0 0
    %877 = vmatpush1.bf16.msra.mxu0 0
    %878 = vmatprep.subr.bf16.mxu0 0
    %879 = vmatpush1.bf16.msra.mxu0 0
    %880 = vmatprep.subr.bf16.mxu0 0
    %881 = vmatpush1.bf16.msra.mxu0 0
    %882 = vmatprep.mubr.bf16.mxu0 0
    %883 = vmatmul.mubr.bf16.gmra.mrb[0].mxu0 %v839
    %v884 = vpop.f32.mrb[0].mxu0
    %v885 = vadd.f32 0.0, %v884
    %v886 = vpop.f32.mrb[0].mxu0
    %v887 = vpop.f32.mrb[0].mxu0
    %v888 = vadd.f32 0.0, %v887
    %v889 = vpop.f32.mrb[0].mxu0
    %890 = vmatprep.mubr.bf16.mxu0 0
    %891 = vmatmul.mubr.bf16.gmra.mrb[0].mxu0 %v842
    %v892 = vpop.f32.mrb[0].mxu0
    %v893 = vadd.f32 0.0, %v892
    %v894 = vpop.f32.mrb[0].mxu0
    %v895 = vpop.f32.mrb[0].mxu0
    %v896 = vadd.f32 0.0, %v895
    %v897 = vpop.f32.mrb[0].mxu0
    %898 = vmatprep.mubr.bf16.mxu0 0
    %899 = vmatmul.mubr.bf16.gmra.mrb[0].mxu0 %v845
    %v900 = vpop.f32.mrb[0].mxu0
    %v901 = vadd.f32 0.0, %v900
    %v902 = vpop.f32.mrb[0].mxu0
    %v903 = vpop.f32.mrb[0].mxu0
    %v904 = vadd.f32 0.0, %v903
    %v905 = vpop.f32.mrb[0].mxu0
    %906 = vmatprep.mubr.bf16.mxu0 0
    %907 = vmatmul.mubr.bf16.gmra.mrb[0].mxu0 %v848
    %v908 = vpop.f32.mrb[0].mxu0
    %v909 = vadd.f32 0.0, %v908
    %v910 = vpop.f32.mrb[0].mxu0
    %v911 = vpop.f32.mrb[0].mxu0
    %v912 = vadd.f32 0.0, %v911
    %v913 = vpop.f32.mrb[0].mxu0
    %914 = vdwg.mxu0
    %v915 = vsel %vm185, %v885, 0.0
    %v916 = vsel %vm185, %v888, 0.0
    %v917 = vadd.f32 %v915, %v916
    %v918 = vsel %vm185, %v893, 0.0
    %v919 = vadd.f32 %v917, %v918
    %v920 = vsel %vm185, %v896, 0.0
    %v921 = vadd.f32 %v919, %v920
    %v922 = vsel %vm185, %v901, 0.0
    %v923 = vadd.f32 %v921, %v922
    %v924 = vsel %vm185, %v904, 0.0
    %v925 = vadd.f32 %v923, %v924
    %v926 = vsel %vm185, %v909, 0.0
    %v927 = vadd.f32 %v925, %v926
    %v928 = vsel %vm185, %v912, 0.0
    %v929 = vadd.f32 %v927, %v928
    %v930 = vrot.slane %v929, 4
    %v931 = vadd.f32 %v929, %v930
    %v932 = vrot.slane %v931, 2
    %v933 = vadd.f32 %v931, %v932
    %v934 = vrot.slane %v933, 1
    %v935 = vadd.f32 %v933, %v934
    %v936 = vmul.f32 %v935, 0.015625
    %v937 = vsub.f32 %v885, %v936
    %v938 = vsub.f32 %v888, %v936
    %v939 = vsub.f32 %v893, %v936
    %v940 = vsub.f32 %v896, %v936
    %v941 = vsub.f32 %v901, %v936
    %v942 = vsub.f32 %v904, %v936
    %v943 = vsub.f32 %v909, %v936
    %v944 = vsub.f32 %v912, %v936
    %v945 = vmul.f32 %v937, %v937
    %v946 = vmul.f32 %v938, %v938
    %v947 = vmul.f32 %v939, %v939
    %v948 = vmul.f32 %v940, %v940
    %v949 = vmul.f32 %v941, %v941
    %v950 = vmul.f32 %v942, %v942
    %v951 = vmul.f32 %v943, %v943
    %v952 = vmul.f32 %v944, %v944
    %v953 = vsel %vm185, %v945, 0.0
    %v954 = vsel %vm185, %v946, 0.0
    %v955 = vadd.f32 %v953, %v954
    %v956 = vsel %vm185, %v947, 0.0
    %v957 = vadd.f32 %v955, %v956
    %v958 = vsel %vm185, %v948, 0.0
    %v959 = vadd.f32 %v957, %v958
    %v960 = vsel %vm185, %v949, 0.0
    %v961 = vadd.f32 %v959, %v960
    %v962 = vsel %vm185, %v950, 0.0
    %v963 = vadd.f32 %v961, %v962
    %v964 = vsel %vm185, %v951, 0.0
    %v965 = vadd.f32 %v963, %v964
    %v966 = vsel %vm185, %v952, 0.0
    %v967 = vadd.f32 %v965, %v966
    %v968 = vrot.slane %v967, 4
    %v969 = vadd.f32 %v967, %v968
    %v970 = vrot.slane %v969, 2
    %v971 = vadd.f32 %v969, %v970
    %v972 = vrot.slane %v971, 1
    %v973 = vadd.f32 %v971, %v972
    %v974 = vmul.f32 %v973, 0.015625
    %v975 = vld [vmem:[#allocation7 + $0x6] sm:$0x1]
    %v976 = vld [vmem:[#allocation7 + $0x7] sm:$0x1]
    %v977 = vadd.f32 %v974, 1e-05
    %v978 = vrsqrt.pop %v977
    %v979 = vmul.f32 %v937, %v978
    %v980 = vmul.f32 %v938, %v978
    %v981 = vmul.f32 %v939, %v978
    %v982 = vmul.f32 %v940, %v978
    %v983 = vmul.f32 %v941, %v978
    %v984 = vmul.f32 %v942, %v978
    %v985 = vmul.f32 %v943, %v978
    %v986 = vmul.f32 %v944, %v978
    %v987 = vlaneseq
    %v988 = vshrl.u32 %v987, 7
    %v989 = vsub.s32 0, %v988
    %v990 = vrot.slane %v975, %v989
    %v991 = vmul.f32 %v979, %v990
    %v992 = vmul.f32 %v980, %v990
    %v993 = vmul.f32 %v981, %v990
    %v994 = vmul.f32 %v982, %v990
    %v995 = vmul.f32 %v983, %v990
    %v996 = vmul.f32 %v984, %v990
    %v997 = vmul.f32 %v985, %v990
    %v998 = vmul.f32 %v986, %v990
    %v999 = vlaneseq
    %v1000 = vshrl.u32 %v999, 7
    %v1001 = vsub.s32 0, %v1000
    %v1002 = vrot.slane %v976, %v1001
    %v1003 = vadd.f32 %v991, %v1002
    %v1004 = vadd.f32 %v992, %v1002
    %v1005 = vadd.f32 %v993, %v1002
    %v1006 = vadd.f32 %v994, %v1002
    %v1007 = vadd.f32 %v995, %v1002
    %v1008 = vadd.f32 %v996, %v1002
    %v1009 = vadd.f32 %v997, %v1002
    %v1010 = vadd.f32 %v998, %v1002
    %vm1011 = vcmp.gt.f32.partialorder %v1003, 0.0
    %vm1012 = vcmp.gt.f32.partialorder %v1004, 0.0
    %vm1013 = vcmp.gt.f32.partialorder %v1005, 0.0
    %vm1014 = vcmp.gt.f32.partialorder %v1006, 0.0
    %vm1015 = vcmp.gt.f32.partialorder %v1007, 0.0
    %vm1016 = vcmp.gt.f32.partialorder %v1008, 0.0
    %vm1017 = vcmp.gt.f32.partialorder %v1009, 0.0
    %vm1018 = vcmp.gt.f32.partialorder %v1010, 0.0
    %v1019 = vmin.f32 %v1003, 0.0
    %v1020 = vmin.f32 %v1004, 0.0
    %v1021 = vmin.f32 %v1005, 0.0
    %v1022 = vmin.f32 %v1006, 0.0
    %v1023 = vmin.f32 %v1007, 0.0
    %v1024 = vmin.f32 %v1008, 0.0
    %v1025 = vmin.f32 %v1009, 0.0
    %v1026 = vmin.f32 %v1010, 0.0
    %v1027 = vmul.f32 %v1019, 1.442695
    %v1028 = vpow.pop %v1027
    %v1029 = vmul.f32 %v1020, 1.442695
    %v1030 = vpow.pop %v1029
    %v1031 = vmul.f32 %v1021, 1.442695
    %v1032 = vpow.pop %v1031
    %v1033 = vmul.f32 %v1022, 1.442695
    %v1034 = vpow.pop %v1033
    %v1035 = vmul.f32 %v1023, 1.442695
    %v1036 = vpow.pop %v1035
    %v1037 = vmul.f32 %v1024, 1.442695
    %v1038 = vpow.pop %v1037
    %v1039 = vmul.f32 %v1025, 1.442695
    %v1040 = vpow.pop %v1039
    %v1041 = vmul.f32 %v1026, 1.442695
    %v1042 = vpow.pop %v1041
    %v1043 = vsub.f32 %v1028, 1.0
    %v1044 = vsub.f32 %v1030, 1.0
    %v1045 = vsub.f32 %v1032, 1.0
    %v1046 = vsub.f32 %v1034, 1.0
    %v1047 = vsub.f32 %v1036, 1.0
    %v1048 = vsub.f32 %v1038, 1.0
    %v1049 = vsub.f32 %v1040, 1.0
    %v1050 = vsub.f32 %v1042, 1.0
    %v1051 = vsel %vm1011, %v1003, %v1043
    %v1052 = vsel %vm1012, %v1004, %v1044
    %v1053 = vsel %vm1013, %v1005, %v1045
    %v1054 = vsel %vm1014, %v1006, %v1046
    %v1055 = vsel %vm1015, %v1007, %v1047
    %v1056 = vsel %vm1016, %v1008, %v1048
    %v1057 = vsel %vm1017, %v1009, %v1049
    %v1058 = vsel %vm1018, %v1010, %v1050
    %v1059 = vpack.c.bf16 %v1052, %v1051
    %v1060 = vpack.c.bf16 %v1054, %v1053
    %v1061 = vpack.c.bf16 %v1056, %v1055
    %v1062 = vpack.c.bf16 %v1058, %v1057
    %v1063 = vld [vmem:[#allocation14] sm:$0xf]
    %v1064 = vld [vmem:[#allocation14 + $0x4] sm:$0xf]
    %v1065 = vld [vmem:[#allocation14 + $0x8] sm:$0xf]
    %v1066 = vld [vmem:[#allocation14 + $0xc] sm:$0xf]
    %v1071 = vunpack.c.l.b16 %v1063
    %v1072 = vunpack.c.l.b16 %v1064
    %v1073 = vunpack.c.l.b16 %v1065
    %v1074 = vunpack.c.l.b16 %v1066
    %v1075 = vpack.c.b16 %v1072, %v1071
    %v1076 = vpack.c.b16 %v1074, %v1073
    %v1080 = vsel %vm185, %v1059, 0
    %v1083 = vsel %vm185, %v1060, 0
    %v1086 = vsel %vm185, %v1061, 0
    %v1089 = vsel %vm185, %v1062, 0
    %1091 = vmatprep.subr.bf16.mxu0 0
    %1092 = vmatpush1.bf16.msra.mxu0 %v1075
    %1093 = vmatprep.subr.bf16.mxu0 0
    %1094 = vmatpush1.bf16.msra.mxu0 %v1076
    %1095 = vmatprep.subr.bf16.mxu0 0
    %1096 = vmatpush1.bf16.msra.mxu0 0
    %1097 = vmatprep.subr.bf16.mxu0 0
    %1098 = vmatpush1.bf16.msra.mxu0 0
    %1099 = vmatprep.subr.bf16.mxu0 0
    %1100 = vmatpush1.bf16.msra.mxu0 0
    %1101 = vmatprep.subr.bf16.mxu0 0
    %1102 = vmatpush1.bf16.msra.mxu0 0
    %1103 = vmatprep.subr.bf16.mxu0 0
    %1104 = vmatpush1.bf16.msra.mxu0 0
    %1105 = vmatprep.subr.bf16.mxu0 0
    %1106 = vmatpush1.bf16.msra.mxu0 0
    %1107 = vmatprep.subr.bf16.mxu0 0
    %1108 = vmatpush1.bf16.msra.mxu0 0
    %1109 = vmatprep.subr.bf16.mxu0 0
    %1110 = vmatpush1.bf16.msra.mxu0 0
    %1111 = vmatprep.subr.bf16.mxu0 0
    %1112 = vmatpush1.bf16.msra.mxu0 0
    %1113 = vmatprep.subr.bf16.mxu0 0
    %1114 = vmatpush1.bf16.msra.mxu0 0
    %1115 = vmatprep.subr.bf16.mxu0 0
    %1116 = vmatpush1.bf16.msra.mxu0 0
    %1117 = vmatprep.subr.bf16.mxu0 0
    %1118 = vmatpush1.bf16.msra.mxu0 0
    %1119 = vmatprep.subr.bf16.mxu0 0
    %1120 = vmatpush1.bf16.msra.mxu0 0
    %1121 = vmatprep.subr.bf16.mxu0 0
    %1122 = vmatpush1.bf16.msra.mxu0 0
    %1123 = vmatprep.mubr.bf16.mxu0 0
    %1124 = vmatmul.mubr.bf16.gmra.mrb[0].mxu0 %v1080
    %v1125 = vpop.f32.mrb[0].mxu0
    %v1126 = vadd.f32 0.0, %v1125
    %v1127 = vpop.f32.mrb[0].mxu0
    %v1128 = vpop.f32.mrb[0].mxu0
    %v1129 = vadd.f32 0.0, %v1128
    %v1130 = vpop.f32.mrb[0].mxu0
    %1131 = vmatprep.mubr.bf16.mxu0 0
    %1132 = vmatmul.mubr.bf16.gmra.mrb[0].mxu0 %v1083
    %v1133 = vpop.f32.mrb[0].mxu0
    %v1134 = vadd.f32 0.0, %v1133
    %v1135 = vpop.f32.mrb[0].mxu0
    %v1136 = vpop.f32.mrb[0].mxu0
    %v1137 = vadd.f32 0.0, %v1136
    %v1138 = vpop.f32.mrb[0].mxu0
    %1139 = vmatprep.mubr.bf16.mxu0 0
    %1140 = vmatmul.mubr.bf16.gmra.mrb[0].mxu0 %v1086
    %v1141 = vpop.f32.mrb[0].mxu0
    %v1142 = vadd.f32 0.0, %v1141
    %v1143 = vpop.f32.mrb[0].mxu0
    %v1144 = vpop.f32.mrb[0].mxu0
    %v1145 = vadd.f32 0.0, %v1144
    %v1146 = vpop.f32.mrb[0].mxu0
    %1147 = vmatprep.mubr.bf16.mxu0 0
    %1148 = vmatmul.mubr.bf16.gmra.mrb[0].mxu0 %v1089
    %v1149 = vpop.f32.mrb[0].mxu0
    %v1150 = vadd.f32 0.0, %v1149
    %v1151 = vpop.f32.mrb[0].mxu0
    %v1152 = vpop.f32.mrb[0].mxu0
    %v1153 = vadd.f32 0.0, %v1152
    %v1154 = vpop.f32.mrb[0].mxu0
    %1155 = vdwg.mxu0
    %1156 = vst [vmem:[#allocation17] sm:$0xff] %v1126
    %1157 = vst [vmem:[#allocation17 + $0x8] sm:$0xff] %v1129
    %1158 = vst [vmem:[#allocation17 + $0x10] sm:$0xff] %v1134
    %1159 = vst [vmem:[#allocation17 + $0x18] sm:$0xff] %v1137
    %1160 = vst [vmem:[#allocation17 + $0x20] sm:$0xff] %v1142
    %1161 = vst [vmem:[#allocation17 + $0x28] sm:$0xff] %v1145
    %1162 = vst [vmem:[#allocation17 + $0x30] sm:$0xff] %v1150
    %1163 = vst [vmem:[#allocation17 + $0x38] sm:$0xff] %v1153
    %1172 = vrot.lane.b32.xlu0 %v593, 16
    %v1173 = vpop.permute.xlu0 %1172
    %1174 = vrot.lane.b32.xlu0 %v594, 16
    %v1175 = vpop.permute.xlu0 %1174
    %1176 = vrot.lane.b32.xlu0 %v595, 16
    %v1177 = vpop.permute.xlu0 %1176
    %1178 = vrot.lane.b32.xlu0 %v596, 16
    %v1179 = vpop.permute.xlu0 %1178
    %1180 = vrot.lane.b32.xlu0 %v597, 16
    %v1181 = vpop.permute.xlu0 %1180
    %1182 = vrot.lane.b32.xlu0 %v598, 16
    %v1183 = vpop.permute.xlu0 %1182
    %1184 = vrot.lane.b32.xlu0 %v599, 16
    %v1185 = vpop.permute.xlu0 %1184
    %1186 = vrot.lane.b32.xlu0 %v600, 16
    %v1187 = vpop.permute.xlu0 %1186
    %1204 = vrot.lane.b32.xlu0 %v770, 32
    %v1205 = vpop.permute.xlu0 %1204
    %1206 = vrot.lane.b32.xlu0 %v771, 32
    %v1207 = vpop.permute.xlu0 %1206
    %1208 = vrot.lane.b32.xlu0 %v772, 32
    %v1209 = vpop.permute.xlu0 %1208
    %1210 = vrot.lane.b32.xlu0 %v773, 32
    %v1211 = vpop.permute.xlu0 %1210
    %1212 = vrot.lane.b32.xlu0 %v774, 32
    %v1213 = vpop.permute.xlu0 %1212
    %1214 = vrot.lane.b32.xlu0 %v775, 32
    %v1215 = vpop.permute.xlu0 %1214
    %1216 = vrot.lane.b32.xlu0 %v776, 32
    %v1217 = vpop.permute.xlu0 %1216
    %1218 = vrot.lane.b32.xlu0 %v777, 32
    %v1219 = vpop.permute.xlu0 %1218
    %1236 = vrot.lane.b32.xlu0 %v1051, 48
    %v1237 = vpop.permute.xlu0 %1236
    %1238 = vrot.lane.b32.xlu0 %v1052, 48
    %v1239 = vpop.permute.xlu0 %1238
    %1240 = vrot.lane.b32.xlu0 %v1053, 48
    %v1241 = vpop.permute.xlu0 %1240
    %1242 = vrot.lane.b32.xlu0 %v1054, 48
    %v1243 = vpop.permute.xlu0 %1242
    %1244 = vrot.lane.b32.xlu0 %v1055, 48
    %v1245 = vpop.permute.xlu0 %1244
    %1246 = vrot.lane.b32.xlu0 %v1056, 48
    %v1247 = vpop.permute.xlu0 %1246
    %1248 = vrot.lane.b32.xlu0 %v1057, 48
    %v1249 = vpop.permute.xlu0 %1248
    %1250 = vrot.lane.b32.xlu0 %v1058, 48
    %v1251 = vpop.permute.xlu0 %1250
    %v1260 = vsel %vm504, %v818, %v1173
    %v1261 = vsel %vm504, %v819, %v1175
    %v1262 = vsel %vm504, %v820, %v1177
    %v1263 = vsel %vm504, %v821, %v1179
    %v1264 = vsel %vm504, %v822, %v1181
    %v1265 = vsel %vm504, %v823, %v1183
    %v1266 = vsel %vm504, %v824, %v1185
    %v1267 = vsel %vm504, %v825, %v1187
    %v1268 = vsel %vm185, %v1260, %v1205
    %v1269 = vsel %vm185, %v1261, %v1207
    %v1270 = vsel %vm185, %v1262, %v1209
    %v1271 = vsel %vm185, %v1263, %v1211
    %v1272 = vsel %vm185, %v1264, %v1213
    %v1273 = vsel %vm185, %v1265, %v1215
    %v1274 = vsel %vm185, %v1266, %v1217
    %v1275 = vsel %vm185, %v1267, %v1219
    %vm1276 = vcmask 392192
    %v1277 = vsel %vm1276, %v1268, %v1237
    %v1278 = vsel %vm1276, %v1269, %v1239
    %v1279 = vsel %vm1276, %v1270, %v1241
    %v1280 = vsel %vm1276, %v1271, %v1243
    %v1281 = vsel %vm1276, %v1272, %v1245
    %v1282 = vsel %vm1276, %v1273, %v1247
    %v1283 = vsel %vm1276, %v1274, %v1249
    %v1284 = vsel %vm1276, %v1275, %v1251
    %vm1285 = vcmask 654336
    %v1286 = vsel %vm1285, %v1277, 0.0
    %v1287 = vsel %vm1285, %v1278, 0.0
    %v1288 = vsel %vm1285, %v1279, 0.0
    %v1289 = vsel %vm1285, %v1280, 0.0
    %v1290 = vsel %vm1285, %v1281, 0.0
    %v1291 = vsel %vm1285, %v1282, 0.0
    %v1292 = vsel %vm1285, %v1283, 0.0
    %v1293 = vsel %vm1285, %v1284, 0.0
    %1294 = vst [vmem:[#allocation16] sm:$0xff] %v1286
    %1295 = vst [vmem:[#allocation16 + $0x8] sm:$0xff] %v1287
    %1296 = vst [vmem:[#allocation16 + $0x10] sm:$0xff] %v1288
    %1297 = vst [vmem:[#allocation16 + $0x18] sm:$0xff] %v1289
    %1298 = vst [vmem:[#allocation16 + $0x20] sm:$0xff] %v1290
    %1299 = vst [vmem:[#allocation16 + $0x28] sm:$0xff] %v1291
    %1300 = vst [vmem:[#allocation16 + $0x30] sm:$0xff] %v1292
    %1301 = vst [vmem:[#allocation16 + $0x38] sm:$0xff] %v1293
    // Predicated region
    $region66: #{tpu_custom_call.1} parent=1 // pred_check
      _
    $region67: #{tpu_custom_call.1} parent=1 // pred_check_branch
      %1303 = sbr.rel (0) target = $region69
    $region68: #{tpu_custom_call.1} parent=1 // pred_region
      %s1305 = ssub.s32 1024, 1024
      %1306 = vsyncadd [#allocation4], %s1305
      %s1307 = sshll.u32 [#allocation16], 4
      %s1308 = int_to_ptr.vmem [resolvable:$true] %s1307
      %1313 = dma.vmem_to_hbm [thread:$0]  %s1308, 1024, %s8, [#allocation4], 128, 128, 8
    $region69: #{tpu_custom_call.1} parent=1 // pred_fallthru
      _
    // Predicated region
    $region70: #{tpu_custom_call.1} parent=1 // pred_check
      _
    $region71: #{tpu_custom_call.1} parent=1 // pred_check_branch
      %1315 = sbr.rel (0) target = $region73
    $region72: #{tpu_custom_call.1} parent=1 // pred_region
      %s1317 = ssub.s32 1024, 1024
      %1318 = vsyncadd [#allocation18], %s1317
      %s1319 = sshll.u32 [#allocation17], 4
      %s1320 = int_to_ptr.vmem [resolvable:$true] %s1319
      %1325 = dma.vmem_to_hbm [thread:$0]  %s1320, 1024, %s9, [#allocation18], 128, 128, 8
    $region73: #{tpu_custom_call.1} parent=1 // pred_fallthru
      _
    // Predicated region
    $region74: #{tpu_custom_call.1} parent=1 // pred_check
      _
    $region75: #{tpu_custom_call.1} parent=1 // pred_check_branch
      %1327 = sbr.rel (0) target = $region77
    $region76: #{tpu_custom_call.1} parent=1 // pred_region
      %1328 = dma.done [#allocation4], 1024
    $region77: #{tpu_custom_call.1} parent=1 // pred_fallthru
      _
    // Predicated region
    $region78: #{tpu_custom_call.1} parent=1 // pred_check
      _
    $region79: #{tpu_custom_call.1} parent=1 // pred_check_branch
      %1330 = sbr.rel (0) target = $region81
    $region80: #{tpu_custom_call.1} parent=1 // pred_region
      %1331 = dma.done [#allocation18], 1024
    $region81: #{tpu_custom_call.1} parent=1 // pred_fallthru
      _
    %1332 = vsyncpa [#allocation3], 1
    %1333 = vsyncpa [#allocation6], 1
    %1334 = vsyncpa [#allocation9], 1
    %1335 = vsyncpa [#allocation12], 1
    %1336 = vsyncpa [#allocation15], 1
    %1337 = vsyncpa [#allocation4], 1
    %1338 = vsyncpa [#allocation18], 1

</llo_original>
